<compile_context>
chip_gen: v5e
topology: v5e:2x2
jax: 0.10.0
libtpu: 0.0.40
codegen_flags: <defaults>
</compile_context>

<pallas_src>
import math
from functools import partial

import jax
import jax.numpy as jnp
from jax.experimental import pallas as pl
from jax.experimental.pallas import tpu as pltpu


MXU_DTYPE = jnp.bfloat16   # MXU operand dtype; accumulation is always f32
RMS_EPS = 1e-5


def _pick_tile(dim, candidates):
    """Largest candidate that evenly divides `dim`, else the full dim."""
    for c in candidates:
        if dim >= c and dim % c == 0:
            return c
    return dim


def _cparams(semantics):
    return pltpu.CompilerParams(
        dimension_semantics=semantics,
        vmem_limit_bytes=48 * 1024 * 1024,
    )


# ----------------------------------------------------------------------------
# Fused RMSNorm + Linear (+bias):  out = rmsnorm(x) * nw @ W + b
# grid = (M//tm, N//tn); K kept whole per tile (norm needs the full row).
# ----------------------------------------------------------------------------

def _rmsnorm_linear_kernel(x_ref, nw_ref, w_ref, b_ref, o_ref, *, mxu_dtype):
    x = x_ref[...].astype(jnp.float32)                       # (tm, K)
    ms = jnp.mean(x * x, axis=-1, keepdims=True)
    xn = (x * jax.lax.rsqrt(ms + RMS_EPS)) * nw_ref[...].astype(jnp.float32)
    acc = jnp.dot(xn.astype(mxu_dtype), w_ref[...].astype(mxu_dtype),
                  preferred_element_type=jnp.float32)
    o_ref[...] = (acc + b_ref[...].astype(jnp.float32)).astype(o_ref.dtype)


def pallas_rmsnorm_linear(x, norm_w, w, b, *, mxu_dtype=MXU_DTYPE):
    M, K = x.shape
    N = w.shape[1]
    tm = _pick_tile(M, (256, 128))
    tn = _pick_tile(N, (512, 256, 128))
    grid = (M // tm, N // tn)
    return pl.pallas_call(
        partial(_rmsnorm_linear_kernel, mxu_dtype=mxu_dtype),
        out_shape=jax.ShapeDtypeStruct((M, N), x.dtype),
        grid=grid,
        in_specs=[
            pl.BlockSpec((tm, K), lambda i, j: (i, 0)),
            pl.BlockSpec((1, K), lambda i, j: (0, 0)),
            pl.BlockSpec((K, tn), lambda i, j: (0, j)),
            pl.BlockSpec((1, tn), lambda i, j: (0, j)),
        ],
        out_specs=pl.BlockSpec((tm, tn), lambda i, j: (i, j)),
        compiler_params=_cparams(("parallel", "parallel")),
    )(x, norm_w.reshape(1, K), w, b.reshape(1, N))


# ----------------------------------------------------------------------------
# Tiled Linear (+bias) with K-reduction accumulator (used for out_proj).
# ----------------------------------------------------------------------------

def _linear_kernel(x_ref, w_ref, b_ref, o_ref, acc_ref, *, mxu_dtype):
    k = pl.program_id(2)

    @pl.when(k == 0)
    def _():
        acc_ref[...] = jnp.zeros_like(acc_ref)

    acc_ref[...] += jnp.dot(x_ref[...].astype(mxu_dtype),
                            w_ref[...].astype(mxu_dtype),
                            preferred_element_type=jnp.float32)

    @pl.when(k == pl.num_programs(2) - 1)
    def _():
        o_ref[...] = (acc_ref[...] + b_ref[...].astype(jnp.float32)).astype(o_ref.dtype)


def pallas_linear(x, w, b, *, mxu_dtype=MXU_DTYPE):
    M, K = x.shape
    N = w.shape[1]
    tm = _pick_tile(M, (256, 128))
    tn = _pick_tile(N, (256, 128))
    tk = _pick_tile(K, (512, 256, 128))
    grid = (M // tm, N // tn, K // tk)
    return pl.pallas_call(
        partial(_linear_kernel, mxu_dtype=mxu_dtype),
        out_shape=jax.ShapeDtypeStruct((M, N), x.dtype),
        grid=grid,
        in_specs=[
            pl.BlockSpec((tm, tk), lambda i, j, k: (i, k)),
            pl.BlockSpec((tk, tn), lambda i, j, k: (k, j)),
            pl.BlockSpec((1, tn), lambda i, j, k: (0, j)),
        ],
        out_specs=pl.BlockSpec((tm, tn), lambda i, j, k: (i, j)),
        scratch_shapes=[pltpu.VMEM((tm, tn), jnp.float32)],
        compiler_params=_cparams(("parallel", "parallel", "arbitrary")),
    )(x, w, b.reshape(1, N))


# ----------------------------------------------------------------------------
# Fused final RMSNorm + tied LM head:  logits = rmsnorm(x)*nw @ wte^T
# (contract against wte (V, C) directly -- no transposed copy of the table)
# ----------------------------------------------------------------------------

def _rmsnorm_tied_head_kernel(x_ref, nw_ref, wte_ref, o_ref, *, mxu_dtype):
    x = x_ref[...].astype(jnp.float32)                       # (tm, C)
    ms = jnp.mean(x * x, axis=-1, keepdims=True)
    xn = (x * jax.lax.rsqrt(ms + RMS_EPS)) * nw_ref[...].astype(jnp.float32)
    w = wte_ref[...].astype(mxu_dtype)                       # (tv, C)
    o_ref[...] = jax.lax.dot_general(
        xn.astype(mxu_dtype), w, (((1,), (1,)), ((), ())),
        preferred_element_type=jnp.float32).astype(o_ref.dtype)


def pallas_rmsnorm_tied_head(x, norm_w, wte, *, mxu_dtype=MXU_DTYPE):
    M, C = x.shape
    V = wte.shape[0]
    tm = _pick_tile(M, (256, 128))
    tv = _pick_tile(V, (512, 256, 128))
    grid = (M // tm, V // tv)
    return pl.pallas_call(
        partial(_rmsnorm_tied_head_kernel, mxu_dtype=mxu_dtype),
        out_shape=jax.ShapeDtypeStruct((M, V), x.dtype),
        grid=grid,
        in_specs=[
            pl.BlockSpec((tm, C), lambda i, j: (i, 0)),
            pl.BlockSpec((1, C), lambda i, j: (0, 0)),
            pl.BlockSpec((tv, C), lambda i, j: (j, 0)),
        ],
        out_specs=pl.BlockSpec((tm, tv), lambda i, j: (i, j)),
        compiler_params=_cparams(("parallel", "parallel")),
    )(x, norm_w.reshape(1, C), wte)


# ----------------------------------------------------------------------------
# Flash-style causal attention: grid = (B, T//tq, T//tk); all heads of one
# batch element per step (batched matmuls), online softmax in f32 scratch.
# ----------------------------------------------------------------------------

def _flash_attn_kernel(q_ref, k_ref, v_ref, o_ref, m_sc, l_sc, acc_sc,
                       *, scale, tq, tk, mxu_dtype):
    qi = pl.program_id(1)
    ki = pl.program_id(2)

    @pl.when(ki == 0)
    def _():
        m_sc[...] = jnp.full_like(m_sc, -1e30)
        l_sc[...] = jnp.zeros_like(l_sc)
        acc_sc[...] = jnp.zeros_like(acc_sc)

    q_start = qi * tq
    k_start = ki * tk

    @pl.when(k_start < q_start + tq)   # skip fully-masked (future) kv blocks
    def _():
        q = q_ref[0].astype(mxu_dtype)               # (H, tq, D)
        k = k_ref[0].astype(mxu_dtype)               # (H, tk, D)
        s = jax.lax.dot_general(
            q, k, (((2,), (2,)), ((0,), (0,))),
            preferred_element_type=jnp.float32) * scale          # (H, tq, tk)
        row = q_start + jax.lax.broadcasted_iota(jnp.int32, (1, tq, tk), 1)
        col = k_start + jax.lax.broadcasted_iota(jnp.int32, (1, tq, tk), 2)
        s = jnp.where(col <= row, s, -1e30)
        m_prev = m_sc[...]
        m_new = jnp.maximum(m_prev, jnp.max(s, axis=-1, keepdims=True))
        alpha = jnp.exp(m_prev - m_new)
        p = jnp.exp(s - m_new)
        l_sc[...] = alpha * l_sc[...] + jnp.sum(p, axis=-1, keepdims=True)
        pv = jax.lax.dot_general(
            p.astype(mxu_dtype), v_ref[0].astype(mxu_dtype),
            (((2,), (1,)), ((0,), (0,))),
            preferred_element_type=jnp.float32)                  # (H, tq, D)
        acc_sc[...] = alpha * acc_sc[...] + pv
        m_sc[...] = m_new

    @pl.when(ki == pl.num_programs(2) - 1)
    def _():
        o_ref[0] = (acc_sc[...] *
                    pl.reciprocal(l_sc[...], approx=False)).astype(o_ref.dtype)


def pallas_causal_attention(q, k, v, *, mxu_dtype=MXU_DTYPE):
    """q, k, v: (B, H, T, D) -> (B, H, T, D) causal softmax attention."""
    B, H, T, D = q.shape
    tq = _pick_tile(T, (256, 128))
    tk = _pick_tile(T, (256, 128))
    scale = 1.0 / math.sqrt(D)
    grid = (B, T // tq, T // tk)
    return pl.pallas_call(
        partial(_flash_attn_kernel, scale=scale, tq=tq, tk=tk, mxu_dtype=mxu_dtype),
        out_shape=jax.ShapeDtypeStruct((B, H, T, D), q.dtype),
        grid=grid,
        in_specs=[
            pl.BlockSpec((1, H, tq, D), lambda b, qi, ki: (b, 0, qi, 0)),
            pl.BlockSpec((1, H, tk, D), lambda b, qi, ki: (b, 0, ki, 0)),
            pl.BlockSpec((1, H, tk, D), lambda b, qi, ki: (b, 0, ki, 0)),
        ],
        out_specs=pl.BlockSpec((1, H, tq, D), lambda b, qi, ki: (b, 0, qi, 0)),
        scratch_shapes=[
            pltpu.VMEM((H, tq, 1), jnp.float32),
            pltpu.VMEM((H, tq, 1), jnp.float32),
            pltpu.VMEM((H, tq, D), jnp.float32),
        ],
        compiler_params=_cparams(("parallel", "parallel", "arbitrary")),
    )(q, k, v)


# ----------------------------------------------------------------------------
# Parallel MoE expert FFN with fused ln2:
#   out[t] = sum_e gate[e, t] * ( a_e * silu(b_e) @ proj_w[e] + proj_b[e] )
# grid = (N//tn, E, H//th): token tiles parallel; expert + hidden-tile axes
# are reductions into a f32 scratch accumulator.
# ----------------------------------------------------------------------------

def _moe_expert_kernel(x_ref, nw_ref, g_ref, fcwa_ref, fcba_ref, fcwb_ref,
                       fcbb_ref, pw_ref, pb_ref, o_ref, acc_ref, *, mxu_dtype):
    e = pl.program_id(1)
    hh = pl.program_id(2)

    @pl.when((e == 0) & (hh == 0))
    def _():
        acc_ref[...] = jnp.zeros_like(acc_ref)

    # fused RMSNorm (ln2) of the token tile; recomputed per step but hidden
    # behind the MXU-bound expert matmuls (VPU/EUP slots).
    x = x_ref[...].astype(jnp.float32)                           # (tn, C)
    ms = jnp.mean(x * x, axis=-1, keepdims=True)
    xn = (x * jax.lax.rsqrt(ms + RMS_EPS)) * nw_ref[...].astype(jnp.float32)
    xm = xn.astype(mxu_dtype)

    wa = fcwa_ref[0].astype(mxu_dtype)                           # (th, C)
    wb = fcwb_ref[0].astype(mxu_dtype)
    a = jax.lax.dot_general(xm, wa, (((1,), (1,)), ((), ())),
                            preferred_element_type=jnp.float32)
    a = a + fcba_ref[0].astype(jnp.float32)                      # (tn, th)
    b = jax.lax.dot_general(xm, wb, (((1,), (1,)), ((), ())),
                            preferred_element_type=jnp.float32)
    b = b + fcbb_ref[0].astype(jnp.float32)
    hidden = a * jax.nn.silu(b)                                  # f32 epilogue

    wp = pw_ref[0].astype(mxu_dtype)                             # (th, C)
    y = jnp.dot(hidden.astype(mxu_dtype), wp,
                preferred_element_type=jnp.float32)              # (tn, C)
    # proj bias contributes once per expert (at the first hidden tile)
    y = y + jnp.where(hh == 0, 1.0, 0.0) * pb_ref[0].astype(jnp.float32)

    ge = g_ref[0].astype(jnp.float32)                            # (tn, 1)
    acc_ref[...] += ge * y

    @pl.when((e == pl.num_programs(1) - 1) & (hh == pl.num_programs(2) - 1))
    def _():
        o_ref[...] = acc_ref[...].astype(o_ref.dtype)


def pallas_moe_experts(x, ln2_w, gating, fc_w, fc_b, proj_w, proj_b,
                       *, mxu_dtype=MXU_DTYPE):
    """x: (N, C) residual stream (ln2 applied in-kernel), gating: (N, E),
    fc_w: (E, 2H, C), fc_b: (E, 2H), proj_w: (E, H, C), proj_b: (E, C)."""
    N, C = x.shape
    E, H2, _ = fc_w.shape
    H = H2 // 2
    tn = _pick_tile(N, (256, 128))
    th = _pick_tile(H, (512, 256, 128))

    # split the GLU halves so the hidden dim can be tiled cleanly
    fc_w_a = fc_w[:, :H, :]
    fc_w_b = fc_w[:, H:, :]
    fc_b_a = fc_b[:, :H].reshape(E, 1, H)
    fc_b_b = fc_b[:, H:].reshape(E, 1, H)
    proj_b3 = proj_b.reshape(E, 1, C)
    gT = gating.T.reshape(E, N, 1)      # expert-major gate columns

    grid = (N // tn, E, H // th)
    return pl.pallas_call(
        partial(_moe_expert_kernel, mxu_dtype=mxu_dtype),
        out_shape=jax.ShapeDtypeStruct((N, C), x.dtype),
        grid=grid,
        in_specs=[
            pl.BlockSpec((tn, C), lambda t, e, h: (t, 0)),
            pl.BlockSpec((1, C), lambda t, e, h: (0, 0)),
            pl.BlockSpec((1, tn, 1), lambda t, e, h: (e, t, 0)),
            pl.BlockSpec((1, th, C), lambda t, e, h: (e, h, 0)),
            pl.BlockSpec((1, 1, th), lambda t, e, h: (e, 0, h)),
            pl.BlockSpec((1, th, C), lambda t, e, h: (e, h, 0)),
            pl.BlockSpec((1, 1, th), lambda t, e, h: (e, 0, h)),
            pl.BlockSpec((1, th, C), lambda t, e, h: (e, h, 0)),
            pl.BlockSpec((1, 1, C), lambda t, e, h: (e, 0, 0)),
        ],
        out_specs=pl.BlockSpec((tn, C), lambda t, e, h: (t, 0)),
        scratch_shapes=[pltpu.VMEM((tn, C), jnp.float32)],
        compiler_params=_cparams(("parallel", "arbitrary", "arbitrary")),
    )(x, ln2_w.reshape(1, C), gT, fc_w_a, fc_b_a, fc_w_b, fc_b_b, proj_w, proj_b3)


# ----------------------------------------------------------------------------
# Plain-JAX glue (RoPE, routing, parameter init)
# ----------------------------------------------------------------------------

def build_sin_cos_rope(seq_len, head_dim, base=10000.0):
    positions = jnp.arange(seq_len, dtype=jnp.float32)[:, None]
    dims = jnp.arange(0, head_dim, 2, dtype=jnp.float32)
    freqs = positions / (base ** (dims / head_dim))
    sin = jnp.sin(freqs)
    cos = jnp.cos(freqs)
    rope = jnp.zeros((seq_len, head_dim), jnp.float32)
    rope = rope.at[:, 0::2].set(sin).at[:, 1::2].set(cos)
    return rope


def apply_rope(x, rope):
    """x: (B, H, T, D), rope: (T, D) with interleaved sin/cos."""
    sin = rope[:, 0::2]
    cos = rope[:, 1::2]
    x0 = x[..., 0::2]
    x1 = x[..., 1::2]
    out0 = x0 * cos - x1 * sin
    out1 = x1 * cos + x0 * sin
    return jnp.stack([out0, out1], axis=-1).reshape(x.shape)


def init_params(key, cfg):
    C = cfg["n_embd"]
    V = cfg["vocab_size"]
    E = cfg["n_experts"] * cfg["m_sub_experts"]
    Hd = cfg["ffn_factor"] * C
    keys = iter(jax.random.split(key, 4 + 8 * cfg["n_layer"]))

    def nrm(shape):
        return 0.02 * jax.random.normal(next(keys), shape, jnp.float32)

    params = {"wte": nrm((V, C)), "lnf_w": jnp.ones((C,), jnp.float32), "blocks": []}
    for _ in range(cfg["n_layer"]):
        params["blocks"].append(dict(
            ln1_w=jnp.ones((C,), jnp.float32),
            qkv_w=nrm((C, 3 * C)), qkv_b=jnp.zeros((3 * C,), jnp.float32),
            out_w=nrm((C, C)), out_b=jnp.zeros((C,), jnp.float32),
            ln2_w=jnp.ones((C,), jnp.float32),
            gate_w=nrm((C, E)), gate_b=jnp.zeros((E,), jnp.float32),
            fc_w=nrm((E, 2 * Hd, C)), fc_b=jnp.zeros((E, 2 * Hd), jnp.float32),
            proj_w=nrm((E, Hd, C)), proj_b=jnp.zeros((E, C), jnp.float32),
        ))
    return params


# ----------------------------------------------------------------------------
# MoeGPT forward (moe_impl='parallel', dropout=0.0, targets=None)
# ----------------------------------------------------------------------------

def moegpt_forward(params, idx, cfg):
    B, T = idx.shape
    C = cfg["n_embd"]
    H = cfg["n_head"]
    Dh = C // H
    V = cfg["vocab_size"]
    N = B * T
    n_shared = cfg["n_shared_experts"] * cfg["m_sub_experts"]
    kk = cfg["n_activated_experts"]
    Etot = cfg["n_experts"] * cfg["m_sub_experts"]

    rope = build_sin_cos_rope(T, Dh, base=cfg["rope_scaling"])

    x = params["wte"][idx]          # (B, T, C) embedding gather (glue)
    total_bal = jnp.float32(0.0)

    for blk in params["blocks"]:
        # --- attention sublayer: fused RMSNorm -> QKV projection ---
        xflat = x.reshape(N, C)
        qkv = pallas_rmsnorm_linear(xflat, blk["ln1_w"], blk["qkv_w"], blk["qkv_b"])
        q, k, v = jnp.split(qkv, 3, axis=-1)

        def to_heads(t):
            return t.reshape(B, T, H, Dh).transpose(0, 2, 1, 3)    # (B, H, T, Dh)

        q, k, v = to_heads(q), to_heads(k), to_heads(v)
        # TODO(synk): fuse RoPE into the QKV epilogue using pltpu.roll instead
        # of the strided even/odd interleave below.
        q = apply_rope(q, rope)
        k = apply_rope(k, rope)
        y = pallas_causal_attention(q, k, v)                       # (B, H, T, Dh)
        y = y.transpose(0, 2, 1, 3).reshape(N, C)
        y = pallas_linear(y, blk["out_w"], blk["out_b"])
        x = x + y.reshape(B, T, C)

        # --- MoE sublayer (parallel impl); ln2 fused into gate & expert kernels
        xflat = x.reshape(N, C)
        logits = pallas_rmsnorm_linear(xflat, blk["ln2_w"], blk["gate_w"], blk["gate_b"])
        post = jax.nn.softmax(logits.astype(jnp.float32), axis=-1).astype(logits.dtype)
        score_sum = post.sum(axis=0)
        shared = post[:, :n_shared]
        rest = post[:, n_shared:]
        topv, topi = jax.lax.top_k(rest, kk)
        mask = jnp.zeros_like(rest).at[jnp.arange(N)[:, None], topi].set(topv)
        combined = jnp.concatenate([shared, mask], axis=-1) * cfg["route_scale"]
        gating = combined / (combined.sum(axis=-1, keepdims=True) + 1e-8)
        usage_count = (combined > 0).astype(jnp.float32).sum(axis=0)

        # TODO(synk): replace the dense parallel MoE with a routed grouped
        # matmul (PrefetchScalarGridSpec over top-k group offsets) so each
        # expert only processes its assigned tokens.
        moe_out = pallas_moe_experts(
            xflat, blk["ln2_w"], gating,
            blk["fc_w"], blk["fc_b"], blk["proj_w"], blk["proj_b"]
        )                                                          # (N, C)
        x = x + moe_out.reshape(B, T, C)

        Kp = float(n_shared + kk)
        usage_factor = float(Etot) / (Kp * N) * usage_count
        score_prob = score_sum / N
        total_bal = total_bal + jnp.sum(usage_factor * score_prob)

    # final RMSNorm fused into the tied LM head; contracts against wte (V, C)
    logits = pallas_rmsnorm_tied_head(x.reshape(N, C), params["lnf_w"], params["wte"])
    return logits.reshape(B, T, V), total_bal


# ----------------------------------------------------------------------------
# main
# ----------------------------------------------------------------------------

if __name__ == "__main__":
    cfg = dict(
        block_size=16,
        vocab_size=128,
        n_layer=2,
        n_head=2,
        n_embd=32,
        n_experts=4,
        m_sub_experts=1,
        n_shared_experts=1,
        n_activated_experts=2,
        route_scale=1.0,
        ffn_factor=2,
        moe_loss_weight=0.01,
        rope_scaling=10000.0,
    )

    key = jax.random.PRNGKey(0)
    k_params, k_idx = jax.random.split(key)
    params = init_params(k_params, cfg)

    B, T = 2, 8
    idx = jax.random.randint(k_idx, (B, T), 0, cfg["vocab_size"], dtype=jnp.int32)

    fwd = jax.jit(partial(moegpt_forward, cfg=cfg))
    logits, bal_loss = fwd(params, idx)
    jax.block_until_ready(logits)
    jax.block_until_ready(bal_loss)

    assert logits.shape == (B, T, cfg["vocab_size"])
    assert jnp.all(jnp.isfinite(logits))
    assert jnp.isfinite(bal_loss)
    print("KERNEL_OK")
</pallas_src>

<mosaic_0001>
module attributes {stable_mosaic.version = 11 : i64} {
  func.func @_rmsnorm_linear_kernel(%arg0: i32, %arg1: i32, %arg2: memref<16x32xf32, #tpu.memory_space<vmem>>, %arg3: memref<1x32xf32, #tpu.memory_space<vmem>>, %arg4: memref<32x96xf32, #tpu.memory_space<vmem>>, %arg5: memref<1x96xf32, #tpu.memory_space<vmem>>, %arg6: memref<16x96xf32, #tpu.memory_space<vmem>>) attributes {dimension_semantics = [#tpu.dimension_semantics<parallel>, #tpu.dimension_semantics<parallel>], iteration_bounds = array<i64: 1, 1>, scalar_prefetch = 0 : i64, scratch_operands = 0 : i64, tpu.core_type = #tpu.core_type<tc>, window_params = [{transform_indices = @transform_0, window_bounds = array<i64: 16, 32>}, {pipeline_mode = #tpu.pipeline_mode<synchronous>, transform_indices = @transform_1, window_bounds = array<i64: 1, 32>}, {transform_indices = @transform_2, window_bounds = array<i64: 32, 96>}, {transform_indices = @transform_3, window_bounds = array<i64: 1, 96>}, {transform_indices = @transform_4, window_bounds = array<i64: 16, 96>}]} {
    %c0 = arith.constant 0 : index
    %c0_0 = arith.constant 0 : index
    %0 = vector.load %arg2[%c0, %c0_0] : memref<16x32xf32, #tpu.memory_space<vmem>>, vector<16x32xf32>
    %1 = arith.mulf %0, %0 : vector<16x32xf32>
    %cst = arith.constant dense<0.000000e+00> : vector<16xf32>
    %2 = vector.multi_reduction <add>, %1, %cst [1] : vector<16x32xf32> to vector<16xf32>
    %3 = vector.shape_cast %2 : vector<16xf32> to vector<16x1xf32>
    %cst_1 = arith.constant 3.200000e+01 : f32
    %4 = vector.broadcast %cst_1 : f32 to vector<16x1xf32>
    %5 = arith.divf %3, %4 : vector<16x1xf32>
    %cst_2 = arith.constant 9.99999974E-6 : f32
    %6 = vector.broadcast %cst_2 : f32 to vector<16x1xf32>
    %7 = arith.addf %5, %6 : vector<16x1xf32>
    %8 = math.rsqrt %7 : vector<16x1xf32>
    %9 = vector.broadcast %8 : vector<16x1xf32> to vector<16x32xf32>
    %10 = arith.mulf %0, %9 : vector<16x32xf32>
    %c0_3 = arith.constant 0 : index
    %c0_4 = arith.constant 0 : index
    %11 = vector.load %arg3[%c0_3, %c0_4] : memref<1x32xf32, #tpu.memory_space<vmem>>, vector<1x32xf32>
    %12 = vector.broadcast %11 : vector<1x32xf32> to vector<16x32xf32>
    %13 = arith.mulf %10, %12 : vector<16x32xf32>
    %14 = arith.truncf %13 : vector<16x32xf32> to vector<16x32xbf16>
    %c0_5 = arith.constant 0 : index
    %c0_6 = arith.constant 0 : index
    %15 = vector.load %arg4[%c0_5, %c0_6] : memref<32x96xf32, #tpu.memory_space<vmem>>, vector<32x96xf32>
    %16 = arith.truncf %15 : vector<32x96xf32> to vector<32x96xbf16>
    %cst_7 = arith.constant dense<0.000000e+00> : vector<16x96xf32>
    %17 = tpu.matmul %14, %16, %cst_7 {dimension_numbers = #tpu.dot_dimension_numbers<[1], [0], [0], [1], [0, 0, 1, 1], [], []>} : vector<16x32xbf16>, vector<32x96xbf16>, vector<16x96xf32> -> vector<16x96xf32>
    %c0_8 = arith.constant 0 : index
    %c0_9 = arith.constant 0 : index
    %18 = vector.load %arg5[%c0_8, %c0_9] : memref<1x96xf32, #tpu.memory_space<vmem>>, vector<1x96xf32>
    %19 = vector.broadcast %18 : vector<1x96xf32> to vector<16x96xf32>
    %20 = arith.addf %17, %19 : vector<16x96xf32>
    %c0_10 = arith.constant 0 : index
    %c0_11 = arith.constant 0 : index
    %21 = vector.load %arg6[%c0_10, %c0_11] : memref<16x96xf32, #tpu.memory_space<vmem>>, vector<16x96xf32>
    tpu.vector_store %arg6[%c0_10, %c0_11], %20 {strides = array<i32>} : memref<16x96xf32, #tpu.memory_space<vmem>>, vector<16x96xf32>,
    return
  }
  func.func @transform_0(%arg0: i32, %arg1: i32) -> (i32, i32) {
    %c0_i32 = arith.constant 0 : i32
    %c0_i32_0 = arith.constant 0 : i32
    return %arg0, %c0_i32 : i32, i32
  }
  func.func @transform_1(%arg0: i32, %arg1: i32) -> (i32, i32) {
    %c0_i32 = arith.constant 0 : i32
    %c0_i32_0 = arith.constant 0 : i32
    %c0_i32_1 = arith.constant 0 : i32
    return %c0_i32, %c0_i32_0 : i32, i32
  }
  func.func @transform_2(%arg0: i32, %arg1: i32) -> (i32, i32) {
    %c0_i32 = arith.constant 0 : i32
    %c0_i32_0 = arith.constant 0 : i32
    return %c0_i32, %arg1 : i32, i32
  }
  func.func @transform_3(%arg0: i32, %arg1: i32) -> (i32, i32) {
    %c0_i32 = arith.constant 0 : i32
    %c0_i32_0 = arith.constant 0 : i32
    return %c0_i32, %arg1 : i32, i32
  }
  func.func @transform_4(%arg0: i32, %arg1: i32) -> (i32, i32) {
    %c0_i32 = arith.constant 0 : i32
    return %arg0, %arg1 : i32, i32
  }
}

module attributes {stable_mosaic.version = 11 : i64} {
  func.func @_flash_attn_kernel(%arg0: i32, %arg1: i32, %arg2: i32, %arg3: memref<1x2x8x16xf32, #tpu.memory_space<vmem>>, %arg4: memref<1x2x8x16xf32, #tpu.memory_space<vmem>>, %arg5: memref<1x2x8x16xf32, #tpu.memory_space<vmem>>, %arg6: memref<1x2x8x16xf32, #tpu.memory_space<vmem>>, %arg7: memref<2x8x1xf32, #tpu.memory_space<vmem>>, %arg8: memref<2x8x1xf32, #tpu.memory_space<vmem>>, %arg9: memref<2x8x16xf32, #tpu.memory_space<vmem>>) attributes {dimension_semantics = [#tpu.dimension_semantics<parallel>, #tpu.dimension_semantics<parallel>, #tpu.dimension_semantics<arbitrary>], iteration_bounds = array<i64: 2, 1, 1>, scalar_prefetch = 0 : i64, scratch_operands = 3 : i64, tpu.core_type = #tpu.core_type<tc>, window_params = [{transform_indices = @transform_0, window_bounds = array<i64: 1, 2, 8, 16>}, {transform_indices = @transform_1, window_bounds = array<i64: 1, 2, 8, 16>}, {transform_indices = @transform_2, window_bounds = array<i64: 1, 2, 8, 16>}, {transform_indices = @transform_3, window_bounds = array<i64: 1, 2, 8, 16>}]} {
    %c0_i32 = arith.constant 0 : i32
    %0 = arith.cmpi eq, %arg2, %c0_i32 : i32
    %1 = arith.extui %0 : i1 to i32
    %c0_i32_0 = arith.constant 0 : i32
    %2 = arith.cmpi ne, %1, %c0_i32_0 : i32
    scf.if %2 {
      %cst = arith.constant -1.000000e+30 : f32
      %12 = vector.broadcast %cst : f32 to vector<2x8x1xf32>
      %c0 = arith.constant 0 : index
      %c0_6 = arith.constant 0 : index
      %c0_7 = arith.constant 0 : index
      %13 = vector.load %arg7[%c0, %c0_6, %c0_7] : memref<2x8x1xf32, #tpu.memory_space<vmem>>, vector<2x8x1xf32>
      tpu.vector_store %arg7[%c0, %c0_6, %c0_7], %12 {strides = array<i32>} : memref<2x8x1xf32, #tpu.memory_space<vmem>>, vector<2x8x1xf32>,
      %cst_8 = arith.constant 0.000000e+00 : f32
      %14 = vector.broadcast %cst_8 : f32 to vector<2x8x1xf32>
      %c0_9 = arith.constant 0 : index
      %c0_10 = arith.constant 0 : index
      %c0_11 = arith.constant 0 : index
      %15 = vector.load %arg8[%c0_9, %c0_10, %c0_11] : memref<2x8x1xf32, #tpu.memory_space<vmem>>, vector<2x8x1xf32>
      tpu.vector_store %arg8[%c0_9, %c0_10, %c0_11], %14 {strides = array<i32>} : memref<2x8x1xf32, #tpu.memory_space<vmem>>, vector<2x8x1xf32>,
      %cst_12 = arith.constant 0.000000e+00 : f32
      %16 = vector.broadcast %cst_12 : f32 to vector<2x8x16xf32>
      %c0_13 = arith.constant 0 : index
      %c0_14 = arith.constant 0 : index
      %c0_15 = arith.constant 0 : index
      %17 = vector.load %arg9[%c0_13, %c0_14, %c0_15] : memref<2x8x16xf32, #tpu.memory_space<vmem>>, vector<2x8x16xf32>
      tpu.vector_store %arg9[%c0_13, %c0_14, %c0_15], %16 {strides = array<i32>} : memref<2x8x16xf32, #tpu.memory_space<vmem>>, vector<2x8x16xf32>,
    } else {
    }
    %c8_i32 = arith.constant 8 : i32
    %3 = arith.muli %arg1, %c8_i32 : i32
    %c8_i32_1 = arith.constant 8 : i32
    %4 = arith.muli %arg2, %c8_i32_1 : i32
    %c8_i32_2 = arith.constant 8 : i32
    %5 = arith.addi %3, %c8_i32_2 : i32
    %6 = arith.cmpi slt, %4, %5 : i32
    %7 = arith.extui %6 : i1 to i32
    %c0_i32_3 = arith.constant 0 : i32
    %8 = arith.cmpi ne, %7, %c0_i32_3 : i32
    scf.if %8 {
      %c0 = arith.constant 0 : index
      %c0_6 = arith.constant 0 : index
      %c0_7 = arith.constant 0 : index
      %c0_8 = arith.constant 0 : index
      %12 = vector.load %arg3[%c0, %c0_6, %c0_7, %c0_8] : memref<1x2x8x16xf32, #tpu.memory_space<vmem>>, vector<1x2x8x16xf32>
      %13 = vector.shape_cast %12 : vector<1x2x8x16xf32> to vector<2x8x16xf32>
      %14 = arith.truncf %13 : vector<2x8x16xf32> to vector<2x8x16xbf16>
      %c0_9 = arith.constant 0 : index
      %c0_10 = arith.constant 0 : index
      %c0_11 = arith.constant 0 : index
      %c0_12 = arith.constant 0 : index
      %15 = vector.load %arg4[%c0_9, %c0_10, %c0_11, %c0_12] : memref<1x2x8x16xf32, #tpu.memory_space<vmem>>, vector<1x2x8x16xf32>
      %16 = vector.shape_cast %15 : vector<1x2x8x16xf32> to vector<2x8x16xf32>
      %17 = arith.truncf %16 : vector<2x8x16xf32> to vector<2x8x16xbf16>
      %cst = arith.constant dense<0.000000e+00> : vector<2x8x8xf32>
      %18 = tpu.matmul %14, %17, %cst {dimension_numbers = #tpu.dot_dimension_numbers<[2], [2], [1], [1], [0, 0, 0, 1, 1, 1], [0], [0]>} : vector<2x8x16xbf16>, vector<2x8x16xbf16>, vector<2x8x8xf32> -> vector<2x8x8xf32>
      %cst_13 = arith.constant 2.500000e-01 : f32
      %19 = vector.broadcast %cst_13 : f32 to vector<2x8x8xf32>
      %20 = arith.mulf %18, %19 : vector<2x8x8xf32>
      %21 = tpu.iota {dimensions = array<i32: 1>} : vector<1x8x8xi32>
      %22 = vector.broadcast %3 : i32 to vector<1x8x8xi32>
      %23 = arith.addi %22, %21 : vector<1x8x8xi32>
      %24 = tpu.iota {dimensions = array<i32: 2>} : vector<1x8x8xi32>
      %25 = vector.broadcast %4 : i32 to vector<1x8x8xi32>
      %26 = arith.addi %25, %24 : vector<1x8x8xi32>
      %27 = arith.cmpi sle, %26, %23 : vector<1x8x8xi32>
      %cst_14 = arith.constant -1.000000e+30 : f32
      %28 = vector.shape_cast %27 : vector<1x8x8xi1> to vector<1x8x8xi1>
      %29 = vector.broadcast %28 : vector<1x8x8xi1> to vector<2x8x8xi1>
      %30 = vector.broadcast %cst_14 : f32 to vector<2x8x8xf32>
      %31 = arith.select %29, %20, %30 : vector<2x8x8xi1>, vector<2x8x8xf32>
      %c0_15 = arith.constant 0 : index
      %c0_16 = arith.constant 0 : index
      %c0_17 = arith.constant 0 : index
      %32 = vector.load %arg7[%c0_15, %c0_16, %c0_17] : memref<2x8x1xf32, #tpu.memory_space<vmem>>, vector<2x8x1xf32>
      %cst_18 = arith.constant dense<0xFF800000> : vector<2x8xf32>
      %33 = vector.multi_reduction <maximumf>, %31, %cst_18 [2] : vector<2x8x8xf32> to vector<2x8xf32>
      %34 = vector.shape_cast %33 : vector<2x8xf32> to vector<2x8x1xf32>
      %35 = arith.maximumf %32, %34 : vector<2x8x1xf32>
      %36 = arith.subf %32, %35 : vector<2x8x1xf32>
      %37 = math.exp %36 : vector<2x8x1xf32>
      %38 = vector.broadcast %35 : vector<2x8x1xf32> to vector<2x8x8xf32>
      %39 = arith.subf %31, %38 : vector<2x8x8xf32>
      %40 = math.exp %39 : vector<2x8x8xf32>
      %c0_19 = arith.constant 0 : index
      %c0_20 = arith.constant 0 : index
      %c0_21 = arith.constant 0 : index
      %41 = vector.load %arg8[%c0_19, %c0_20, %c0_21] : memref<2x8x1xf32, #tpu.memory_space<vmem>>, vector<2x8x1xf32>
      %42 = arith.mulf %37, %41 : vector<2x8x1xf32>
      %cst_22 = arith.constant dense<0.000000e+00> : vector<2x8xf32>
      %43 = vector.multi_reduction <add>, %40, %cst_22 [2] : vector<2x8x8xf32> to vector<2x8xf32>
      %44 = vector.shape_cast %43 : vector<2x8xf32> to vector<2x8x1xf32>
      %45 = arith.addf %42, %44 : vector<2x8x1xf32>
      %c0_23 = arith.constant 0 : index
      %c0_24 = arith.constant 0 : index
      %c0_25 = arith.constant 0 : index
      %46 = vector.load %arg8[%c0_23, %c0_24, %c0_25] : memref<2x8x1xf32, #tpu.memory_space<vmem>>, vector<2x8x1xf32>
      tpu.vector_store %arg8[%c0_23, %c0_24, %c0_25], %45 {strides = array<i32>} : memref<2x8x1xf32, #tpu.memory_space<vmem>>, vector<2x8x1xf32>,
      %47 = arith.truncf %40 : vector<2x8x8xf32> to vector<2x8x8xbf16>
      %c0_26 = arith.constant 0 : index
      %c0_27 = arith.constant 0 : index
      %c0_28 = arith.constant 0 : index
      %c0_29 = arith.constant 0 : index
      %48 = vector.load %arg5[%c0_26, %c0_27, %c0_28, %c0_29] : memref<1x2x8x16xf32, #tpu.memory_space<vmem>>, vector<1x2x8x16xf32>
      %49 = vector.shape_cast %48 : vector<1x2x8x16xf32> to vector<2x8x16xf32>
      %50 = arith.truncf %49 : vector<2x8x16xf32> to vector<2x8x16xbf16>
      %cst_30 = arith.constant dense<0.000000e+00> : vector<2x8x16xf32>
      %51 = tpu.matmul %47, %50, %cst_30 {dimension_numbers = #tpu.dot_dimension_numbers<[2], [1], [1], [2], [0, 0, 0, 1, 1, 2], [0], [0]>} : vector<2x8x8xbf16>, vector<2x8x16xbf16>, vector<2x8x16xf32> -> vector<2x8x16xf32>
      %c0_31 = arith.constant 0 : index
      %c0_32 = arith.constant 0 : index
      %c0_33 = arith.constant 0 : index
      %52 = vector.load %arg9[%c0_31, %c0_32, %c0_33] : memref<2x8x16xf32, #tpu.memory_space<vmem>>, vector<2x8x16xf32>
      %53 = vector.broadcast %37 : vector<2x8x1xf32> to vector<2x8x16xf32>
      %54 = arith.mulf %53, %52 : vector<2x8x16xf32>
      %55 = arith.addf %54, %51 : vector<2x8x16xf32>
      %c0_34 = arith.constant 0 : index
      %c0_35 = arith.constant 0 : index
      %c0_36 = arith.constant 0 : index
      %56 = vector.load %arg9[%c0_34, %c0_35, %c0_36] : memref<2x8x16xf32, #tpu.memory_space<vmem>>, vector<2x8x16xf32>
      tpu.vector_store %arg9[%c0_34, %c0_35, %c0_36], %55 {strides = array<i32>} : memref<2x8x16xf32, #tpu.memory_space<vmem>>, vector<2x8x16xf32>,
      %c0_37 = arith.constant 0 : index
      %c0_38 = arith.constant 0 : index
      %c0_39 = arith.constant 0 : index
      %57 = vector.load %arg7[%c0_37, %c0_38, %c0_39] : memref<2x8x1xf32, #tpu.memory_space<vmem>>, vector<2x8x1xf32>
      tpu.vector_store %arg7[%c0_37, %c0_38, %c0_39], %35 {strides = array<i32>} : memref<2x8x1xf32, #tpu.memory_space<vmem>>, vector<2x8x1xf32>,
    } else {
    }
    %c0_i32_4 = arith.constant 0 : i32
    %9 = arith.cmpi eq, %arg2, %c0_i32_4 : i32
    %10 = arith.extui %9 : i1 to i32
    %c0_i32_5 = arith.constant 0 : i32
    %11 = arith.cmpi ne, %10, %c0_i32_5 : i32
    scf.if %11 {
      %c0 = arith.constant 0 : index
      %c0_6 = arith.constant 0 : index
      %c0_7 = arith.constant 0 : index
      %12 = vector.load %arg9[%c0, %c0_6, %c0_7] : memref<2x8x16xf32, #tpu.memory_space<vmem>>, vector<2x8x16xf32>
      %c0_8 = arith.constant 0 : index
      %c0_9 = arith.constant 0 : index
      %c0_10 = arith.constant 0 : index
      %13 = vector.load %arg8[%c0_8, %c0_9, %c0_10] : memref<2x8x1xf32, #tpu.memory_space<vmem>>, vector<2x8x1xf32>
      %14 = tpu.reciprocal %13 : vector<2x8x1xf32> -> vector<2x8x1xf32>
      %15 = vector.broadcast %14 : vector<2x8x1xf32> to vector<2x8x16xf32>
      %16 = arith.mulf %12, %15 : vector<2x8x16xf32>
      %c0_11 = arith.constant 0 : index
      %c0_12 = arith.constant 0 : index
      %c0_13 = arith.constant 0 : index
      %c0_14 = arith.constant 0 : index
      %17 = vector.load %arg6[%c0_11, %c0_12, %c0_13, %c0_14] : memref<1x2x8x16xf32, #tpu.memory_space<vmem>>, vector<1x2x8x16xf32>
      %18 = vector.shape_cast %17 : vector<1x2x8x16xf32> to vector<2x8x16xf32>
      %19 = vector.shape_cast %16 : vector<2x8x16xf32> to vector<1x2x8x16xf32>
      tpu.vector_store %arg6[%c0_11, %c0_12, %c0_13, %c0_14], %19 {strides = array<i32>} : memref<1x2x8x16xf32, #tpu.memory_space<vmem>>, vector<1x2x8x16xf32>,
    } else {
    }
    return
  }
  func.func @transform_0(%arg0: i32, %arg1: i32, %arg2: i32) -> (i32, i32, i32, i32) {
    %c0_i32 = arith.constant 0 : i32
    %c0_i32_0 = arith.constant 0 : i32
    %c0_i32_1 = arith.constant 0 : i32
    return %arg0, %c0_i32, %arg1, %c0_i32_0 : i32, i32, i32, i32
  }
  func.func @transform_1(%arg0: i32, %arg1: i32, %arg2: i32) -> (i32, i32, i32, i32) {
    %c0_i32 = arith.constant 0 : i32
    %c0_i32_0 = arith.constant 0 : i32
    %c0_i32_1 = arith.constant 0 : i32
    return %arg0, %c0_i32, %arg2, %c0_i32_0 : i32, i32, i32, i32
  }
  func.func @transform_2(%arg0: i32, %arg1: i32, %arg2: i32) -> (i32, i32, i32, i32) {
    %c0_i32 = arith.constant 0 : i32
    %c0_i32_0 = arith.constant 0 : i32
    %c0_i32_1 = arith.constant 0 : i32
    return %arg0, %c0_i32, %arg2, %c0_i32_0 : i32, i32, i32, i32
  }
  func.func @transform_3(%arg0: i32, %arg1: i32, %arg2: i32) -> (i32, i32, i32, i32) {
    %c0_i32 = arith.constant 0 : i32
    %c0_i32_0 = arith.constant 0 : i32
    %c0_i32_1 = arith.constant 0 : i32
    return %arg0, %c0_i32, %arg1, %c0_i32_0 : i32, i32, i32, i32
  }
}

module attributes {stable_mosaic.version = 11 : i64} {
  func.func @_linear_kernel(%arg0: i32, %arg1: i32, %arg2: i32, %arg3: memref<16x32xf32, #tpu.memory_space<vmem>>, %arg4: memref<32x32xf32, #tpu.memory_space<vmem>>, %arg5: memref<1x32xf32, #tpu.memory_space<vmem>>, %arg6: memref<16x32xf32, #tpu.memory_space<vmem>>, %arg7: memref<16x32xf32, #tpu.memory_space<vmem>>) attributes {dimension_semantics = [#tpu.dimension_semantics<parallel>, #tpu.dimension_semantics<parallel>, #tpu.dimension_semantics<arbitrary>], iteration_bounds = array<i64: 1, 1, 1>, scalar_prefetch = 0 : i64, scratch_operands = 1 : i64, tpu.core_type = #tpu.core_type<tc>, window_params = [{transform_indices = @transform_0, window_bounds = array<i64: 16, 32>}, {transform_indices = @transform_1, window_bounds = array<i64: 32, 32>}, {transform_indices = @transform_2, window_bounds = array<i64: 1, 32>}, {transform_indices = @transform_3, window_bounds = array<i64: 16, 32>}]} {
    %c0_i32 = arith.constant 0 : i32
    %0 = arith.cmpi eq, %arg2, %c0_i32 : i32
    %1 = arith.extui %0 : i1 to i32
    %c0_i32_0 = arith.constant 0 : i32
    %2 = arith.cmpi ne, %1, %c0_i32_0 : i32
    scf.if %2 {
      %cst_10 = arith.constant 0.000000e+00 : f32
      %14 = vector.broadcast %cst_10 : f32 to vector<16x32xf32>
      %c0_11 = arith.constant 0 : index
      %c0_12 = arith.constant 0 : index
      %15 = vector.load %arg7[%c0_11, %c0_12] : memref<16x32xf32, #tpu.memory_space<vmem>>, vector<16x32xf32>
      tpu.vector_store %arg7[%c0_11, %c0_12], %14 {strides = array<i32>} : memref<16x32xf32, #tpu.memory_space<vmem>>, vector<16x32xf32>,
    } else {
    }
    %c0 = arith.constant 0 : index
    %c0_1 = arith.constant 0 : index
    %3 = vector.load %arg7[%c0, %c0_1] : memref<16x32xf32, #tpu.memory_space<vmem>>, vector<16x32xf32>
    %c0_2 = arith.constant 0 : index
    %c0_3 = arith.constant 0 : index
    %4 = vector.load %arg3[%c0_2, %c0_3] : memref<16x32xf32, #tpu.memory_space<vmem>>, vector<16x32xf32>
    %5 = arith.truncf %4 : vector<16x32xf32> to vector<16x32xbf16>
    %c0_4 = arith.constant 0 : index
    %c0_5 = arith.constant 0 : index
    %6 = vector.load %arg4[%c0_4, %c0_5] : memref<32x32xf32, #tpu.memory_space<vmem>>, vector<32x32xf32>
    %7 = arith.truncf %6 : vector<32x32xf32> to vector<32x32xbf16>
    %cst = arith.constant dense<0.000000e+00> : vector<16x32xf32>
    %8 = tpu.matmul %5, %7, %cst {dimension_numbers = #tpu.dot_dimension_numbers<[1], [0], [0], [1], [0, 0, 1, 1], [], []>} : vector<16x32xbf16>, vector<32x32xbf16>, vector<16x32xf32> -> vector<16x32xf32>
    %9 = arith.addf %3, %8 : vector<16x32xf32>
    %c0_6 = arith.constant 0 : index
    %c0_7 = arith.constant 0 : index
    %10 = vector.load %arg7[%c0_6, %c0_7] : memref<16x32xf32, #tpu.memory_space<vmem>>, vector<16x32xf32>
    tpu.vector_store %arg7[%c0_6, %c0_7], %9 {strides = array<i32>} : memref<16x32xf32, #tpu.memory_space<vmem>>, vector<16x32xf32>,
    %c0_i32_8 = arith.constant 0 : i32
    %11 = arith.cmpi eq, %arg2, %c0_i32_8 : i32
    %12 = arith.extui %11 : i1 to i32
    %c0_i32_9 = arith.constant 0 : i32
    %13 = arith.cmpi ne, %12, %c0_i32_9 : i32
    scf.if %13 {
      %c0_10 = arith.constant 0 : index
      %c0_11 = arith.constant 0 : index
      %14 = vector.load %arg7[%c0_10, %c0_11] : memref<16x32xf32, #tpu.memory_space<vmem>>, vector<16x32xf32>
      %c0_12 = arith.constant 0 : index
      %c0_13 = arith.constant 0 : index
      %15 = vector.load %arg5[%c0_12, %c0_13] : memref<1x32xf32, #tpu.memory_space<vmem>>, vector<1x32xf32>
      %16 = vector.broadcast %15 : vector<1x32xf32> to vector<16x32xf32>
      %17 = arith.addf %14, %16 : vector<16x32xf32>
      %c0_14 = arith.constant 0 : index
      %c0_15 = arith.constant 0 : index
      %18 = vector.load %arg6[%c0_14, %c0_15] : memref<16x32xf32, #tpu.memory_space<vmem>>, vector<16x32xf32>
      tpu.vector_store %arg6[%c0_14, %c0_15], %17 {strides = array<i32>} : memref<16x32xf32, #tpu.memory_space<vmem>>, vector<16x32xf32>,
    } else {
    }
    return
  }
  func.func @transform_0(%arg0: i32, %arg1: i32, %arg2: i32) -> (i32, i32) {
    %c0_i32 = arith.constant 0 : i32
    return %arg0, %arg2 : i32, i32
  }
  func.func @transform_1(%arg0: i32, %arg1: i32, %arg2: i32) -> (i32, i32) {
    %c0_i32 = arith.constant 0 : i32
    return %arg2, %arg1 : i32, i32
  }
  func.func @transform_2(%arg0: i32, %arg1: i32, %arg2: i32) -> (i32, i32) {
    %c0_i32 = arith.constant 0 : i32
    %c0_i32_0 = arith.constant 0 : i32
    return %c0_i32, %arg1 : i32, i32
  }
  func.func @transform_3(%arg0: i32, %arg1: i32, %arg2: i32) -> (i32, i32) {
    %c0_i32 = arith.constant 0 : i32
    return %arg0, %arg1 : i32, i32
  }
}

module attributes {stable_mosaic.version = 11 : i64} {
  func.func @_rmsnorm_linear_kernel(%arg0: i32, %arg1: i32, %arg2: memref<16x32xf32, #tpu.memory_space<vmem>>, %arg3: memref<1x32xf32, #tpu.memory_space<vmem>>, %arg4: memref<32x4xf32, #tpu.memory_space<vmem>>, %arg5: memref<1x4xf32, #tpu.memory_space<vmem>>, %arg6: memref<16x4xf32, #tpu.memory_space<vmem>>) attributes {dimension_semantics = [#tpu.dimension_semantics<parallel>, #tpu.dimension_semantics<parallel>], iteration_bounds = array<i64: 1, 1>, scalar_prefetch = 0 : i64, scratch_operands = 0 : i64, tpu.core_type = #tpu.core_type<tc>, window_params = [{transform_indices = @transform_0, window_bounds = array<i64: 16, 32>}, {pipeline_mode = #tpu.pipeline_mode<synchronous>, transform_indices = @transform_1, window_bounds = array<i64: 1, 32>}, {transform_indices = @transform_2, window_bounds = array<i64: 32, 4>}, {transform_indices = @transform_3, window_bounds = array<i64: 1, 4>}, {transform_indices = @transform_4, window_bounds = array<i64: 16, 4>}]} {
    %c0 = arith.constant 0 : index
    %c0_0 = arith.constant 0 : index
    %0 = vector.load %arg2[%c0, %c0_0] : memref<16x32xf32, #tpu.memory_space<vmem>>, vector<16x32xf32>
    %1 = arith.mulf %0, %0 : vector<16x32xf32>
    %cst = arith.constant dense<0.000000e+00> : vector<16xf32>
    %2 = vector.multi_reduction <add>, %1, %cst [1] : vector<16x32xf32> to vector<16xf32>
    %3 = vector.shape_cast %2 : vector<16xf32> to vector<16x1xf32>
    %cst_1 = arith.constant 3.200000e+01 : f32
    %4 = vector.broadcast %cst_1 : f32 to vector<16x1xf32>
    %5 = arith.divf %3, %4 : vector<16x1xf32>
    %cst_2 = arith.constant 9.99999974E-6 : f32
    %6 = vector.broadcast %cst_2 : f32 to vector<16x1xf32>
    %7 = arith.addf %5, %6 : vector<16x1xf32>
    %8 = math.rsqrt %7 : vector<16x1xf32>
    %9 = vector.broadcast %8 : vector<16x1xf32> to vector<16x32xf32>
    %10 = arith.mulf %0, %9 : vector<16x32xf32>
    %c0_3 = arith.constant 0 : index
    %c0_4 = arith.constant 0 : index
    %11 = vector.load %arg3[%c0_3, %c0_4] : memref<1x32xf32, #tpu.memory_space<vmem>>, vector<1x32xf32>
    %12 = vector.broadcast %11 : vector<1x32xf32> to vector<16x32xf32>
    %13 = arith.mulf %10, %12 : vector<16x32xf32>
    %14 = arith.truncf %13 : vector<16x32xf32> to vector<16x32xbf16>
    %c0_5 = arith.constant 0 : index
    %c0_6 = arith.constant 0 : index
    %15 = vector.load %arg4[%c0_5, %c0_6] : memref<32x4xf32, #tpu.memory_space<vmem>>, vector<32x4xf32>
    %16 = arith.truncf %15 : vector<32x4xf32> to vector<32x4xbf16>
    %cst_7 = arith.constant dense<0.000000e+00> : vector<16x4xf32>
    %17 = tpu.matmul %14, %16, %cst_7 {dimension_numbers = #tpu.dot_dimension_numbers<[1], [0], [0], [1], [0, 0, 1, 1], [], []>} : vector<16x32xbf16>, vector<32x4xbf16>, vector<16x4xf32> -> vector<16x4xf32>
    %c0_8 = arith.constant 0 : index
    %c0_9 = arith.constant 0 : index
    %18 = vector.load %arg5[%c0_8, %c0_9] : memref<1x4xf32, #tpu.memory_space<vmem>>, vector<1x4xf32>
    %19 = vector.broadcast %18 : vector<1x4xf32> to vector<16x4xf32>
    %20 = arith.addf %17, %19 : vector<16x4xf32>
    %c0_10 = arith.constant 0 : index
    %c0_11 = arith.constant 0 : index
    %21 = vector.load %arg6[%c0_10, %c0_11] : memref<16x4xf32, #tpu.memory_space<vmem>>, vector<16x4xf32>
    tpu.vector_store %arg6[%c0_10, %c0_11], %20 {strides = array<i32>} : memref<16x4xf32, #tpu.memory_space<vmem>>, vector<16x4xf32>,
    return
  }
  func.func @transform_0(%arg0: i32, %arg1: i32) -> (i32, i32) {
    %c0_i32 = arith.constant 0 : i32
    %c0_i32_0 = arith.constant 0 : i32
    return %arg0, %c0_i32 : i32, i32
  }
  func.func @transform_1(%arg0: i32, %arg1: i32) -> (i32, i32) {
    %c0_i32 = arith.constant 0 : i32
    %c0_i32_0 = arith.constant 0 : i32
    %c0_i32_1 = arith.constant 0 : i32
    return %c0_i32, %c0_i32_0 : i32, i32
  }
  func.func @transform_2(%arg0: i32, %arg1: i32) -> (i32, i32) {
    %c0_i32 = arith.constant 0 : i32
    %c0_i32_0 = arith.constant 0 : i32
    return %c0_i32, %arg1 : i32, i32
  }
  func.func @transform_3(%arg0: i32, %arg1: i32) -> (i32, i32) {
    %c0_i32 = arith.constant 0 : i32
    %c0_i32_0 = arith.constant 0 : i32
    return %c0_i32, %arg1 : i32, i32
  }
  func.func @transform_4(%arg0: i32, %arg1: i32) -> (i32, i32) {
    %c0_i32 = arith.constant 0 : i32
    return %arg0, %arg1 : i32, i32
  }
}

module attributes {stable_mosaic.version = 11 : i64} {
  func.func @_moe_expert_kernel(%arg0: i32, %arg1: i32, %arg2: i32, %arg3: memref<16x32xf32, #tpu.memory_space<vmem>>, %arg4: memref<1x32xf32, #tpu.memory_space<vmem>>, %arg5: memref<1x16x1xf32, #tpu.memory_space<vmem>>, %arg6: memref<1x64x32xf32, #tpu.memory_space<vmem>>, %arg7: memref<1x1x64xf32, #tpu.memory_space<vmem>>, %arg8: memref<1x64x32xf32, #tpu.memory_space<vmem>>, %arg9: memref<1x1x64xf32, #tpu.memory_space<vmem>>, %arg10: memref<1x64x32xf32, #tpu.memory_space<vmem>>, %arg11: memref<1x1x32xf32, #tpu.memory_space<vmem>>, %arg12: memref<16x32xf32, #tpu.memory_space<vmem>>, %arg13: memref<16x32xf32, #tpu.memory_space<vmem>>) attributes {dimension_semantics = [#tpu.dimension_semantics<parallel>, #tpu.dimension_semantics<arbitrary>, #tpu.dimension_semantics<arbitrary>], iteration_bounds = array<i64: 1, 4, 1>, scalar_prefetch = 0 : i64, scratch_operands = 1 : i64, tpu.core_type = #tpu.core_type<tc>, window_params = [{transform_indices = @transform_0, window_bounds = array<i64: 16, 32>}, {pipeline_mode = #tpu.pipeline_mode<synchronous>, transform_indices = @transform_1, window_bounds = array<i64: 1, 32>}, {transform_indices = @transform_2, window_bounds = array<i64: 1, 16, 1>}, {transform_indices = @transform_3, window_bounds = array<i64: 1, 64, 32>}, {transform_indices = @transform_4, window_bounds = array<i64: 1, 1, 64>}, {transform_indices = @transform_5, window_bounds = array<i64: 1, 64, 32>}, {transform_indices = @transform_6, window_bounds = array<i64: 1, 1, 64>}, {transform_indices = @transform_7, window_bounds = array<i64: 1, 64, 32>}, {transform_indices = @transform_8, window_bounds = array<i64: 1, 1, 32>}, {transform_indices = @transform_9, window_bounds = array<i64: 16, 32>}]} {
    %c0_i32 = arith.constant 0 : i32
    %0 = arith.cmpi eq, %arg1, %c0_i32 : i32
    %c0_i32_0 = arith.constant 0 : i32
    %1 = arith.cmpi eq, %arg2, %c0_i32_0 : i32
    %2 = arith.andi %0, %1 : i1
    %3 = arith.extui %2 : i1 to i32
    %c0_i32_1 = arith.constant 0 : i32
    %4 = arith.cmpi ne, %3, %c0_i32_1 : i32
    scf.if %4 {
      %cst_41 = arith.constant 0.000000e+00 : f32
      %68 = vector.broadcast %cst_41 : f32 to vector<16x32xf32>
      %c0_42 = arith.constant 0 : index
      %c0_43 = arith.constant 0 : index
      %69 = vector.load %arg13[%c0_42, %c0_43] : memref<16x32xf32, #tpu.memory_space<vmem>>, vector<16x32xf32>
      tpu.vector_store %arg13[%c0_42, %c0_43], %68 {strides = array<i32>} : memref<16x32xf32, #tpu.memory_space<vmem>>, vector<16x32xf32>,
    } else {
    }
    %c0 = arith.constant 0 : index
    %c0_2 = arith.constant 0 : index
    %5 = vector.load %arg3[%c0, %c0_2] : memref<16x32xf32, #tpu.memory_space<vmem>>, vector<16x32xf32>
    %6 = arith.mulf %5, %5 : vector<16x32xf32>
    %cst = arith.constant dense<0.000000e+00> : vector<16xf32>
    %7 = vector.multi_reduction <add>, %6, %cst [1] : vector<16x32xf32> to vector<16xf32>
    %8 = vector.shape_cast %7 : vector<16xf32> to vector<16x1xf32>
    %cst_3 = arith.constant 3.200000e+01 : f32
    %9 = vector.broadcast %cst_3 : f32 to vector<16x1xf32>
    %10 = arith.divf %8, %9 : vector<16x1xf32>
    %cst_4 = arith.constant 9.99999974E-6 : f32
    %11 = vector.broadcast %cst_4 : f32 to vector<16x1xf32>
    %12 = arith.addf %10, %11 : vector<16x1xf32>
    %13 = math.rsqrt %12 : vector<16x1xf32>
    %14 = vector.broadcast %13 : vector<16x1xf32> to vector<16x32xf32>
    %15 = arith.mulf %5, %14 : vector<16x32xf32>
    %c0_5 = arith.constant 0 : index
    %c0_6 = arith.constant 0 : index
    %16 = vector.load %arg4[%c0_5, %c0_6] : memref<1x32xf32, #tpu.memory_space<vmem>>, vector<1x32xf32>
    %17 = vector.broadcast %16 : vector<1x32xf32> to vector<16x32xf32>
    %18 = arith.mulf %15, %17 : vector<16x32xf32>
    %19 = arith.truncf %18 : vector<16x32xf32> to vector<16x32xbf16>
    %c0_7 = arith.constant 0 : index
    %c0_8 = arith.constant 0 : index
    %c0_9 = arith.constant 0 : index
    %20 = vector.load %arg6[%c0_7, %c0_8, %c0_9] : memref<1x64x32xf32, #tpu.memory_space<vmem>>, vector<1x64x32xf32>
    %21 = vector.shape_cast %20 : vector<1x64x32xf32> to vector<64x32xf32>
    %22 = arith.truncf %21 : vector<64x32xf32> to vector<64x32xbf16>
    %c0_10 = arith.constant 0 : index
    %c0_11 = arith.constant 0 : index
    %c0_12 = arith.constant 0 : index
    %23 = vector.load %arg8[%c0_10, %c0_11, %c0_12] : memref<1x64x32xf32, #tpu.memory_space<vmem>>, vector<1x64x32xf32>
    %24 = vector.shape_cast %23 : vector<1x64x32xf32> to vector<64x32xf32>
    %25 = arith.truncf %24 : vector<64x32xf32> to vector<64x32xbf16>
    %cst_13 = arith.constant dense<0.000000e+00> : vector<16x64xf32>
    %26 = tpu.matmul %19, %22, %cst_13 {dimension_numbers = #tpu.dot_dimension_numbers<[1], [1], [0], [0], [0, 0, 1, 0], [], []>} : vector<16x32xbf16>, vector<64x32xbf16>, vector<16x64xf32> -> vector<16x64xf32>
    %c0_14 = arith.constant 0 : index
    %c0_15 = arith.constant 0 : index
    %c0_16 = arith.constant 0 : index
    %27 = vector.load %arg7[%c0_14, %c0_15, %c0_16] : memref<1x1x64xf32, #tpu.memory_space<vmem>>, vector<1x1x64xf32>
    %28 = vector.shape_cast %27 : vector<1x1x64xf32> to vector<1x64xf32>
    %29 = vector.broadcast %28 : vector<1x64xf32> to vector<16x64xf32>
    %30 = arith.addf %26, %29 : vector<16x64xf32>
    %cst_17 = arith.constant dense<0.000000e+00> : vector<16x64xf32>
    %31 = tpu.matmul %19, %25, %cst_17 {dimension_numbers = #tpu.dot_dimension_numbers<[1], [1], [0], [0], [0, 0, 1, 0], [], []>} : vector<16x32xbf16>, vector<64x32xbf16>, vector<16x64xf32> -> vector<16x64xf32>
    %c0_18 = arith.constant 0 : index
    %c0_19 = arith.constant 0 : index
    %c0_20 = arith.constant 0 : index
    %32 = vector.load %arg9[%c0_18, %c0_19, %c0_20] : memref<1x1x64xf32, #tpu.memory_space<vmem>>, vector<1x1x64xf32>
    %33 = vector.shape_cast %32 : vector<1x1x64xf32> to vector<1x64xf32>
    %34 = vector.broadcast %33 : vector<1x64xf32> to vector<16x64xf32>
    %35 = arith.addf %31, %34 : vector<16x64xf32>
    %36 = arith.negf %35 : vector<16x64xf32>
    %37 = math.exp %36 : vector<16x64xf32>
    %cst_21 = arith.constant 1.000000e+00 : f32
    %38 = vector.broadcast %cst_21 : f32 to vector<16x64xf32>
    %39 = arith.addf %38, %37 : vector<16x64xf32>
    %40 = arith.divf %38, %39 : vector<16x64xf32>
    %41 = arith.mulf %35, %40 : vector<16x64xf32>
    %42 = arith.mulf %30, %41 : vector<16x64xf32>
    %c0_22 = arith.constant 0 : index
    %c0_23 = arith.constant 0 : index
    %c0_24 = arith.constant 0 : index
    %43 = vector.load %arg10[%c0_22, %c0_23, %c0_24] : memref<1x64x32xf32, #tpu.memory_space<vmem>>, vector<1x64x32xf32>
    %44 = vector.shape_cast %43 : vector<1x64x32xf32> to vector<64x32xf32>
    %45 = arith.truncf %44 : vector<64x32xf32> to vector<64x32xbf16>
    %46 = arith.truncf %42 : vector<16x64xf32> to vector<16x64xbf16>
    %cst_25 = arith.constant dense<0.000000e+00> : vector<16x32xf32>
    %47 = tpu.matmul %46, %45, %cst_25 {dimension_numbers = #tpu.dot_dimension_numbers<[1], [0], [0], [1], [0, 0, 1, 1], [], []>} : vector<16x64xbf16>, vector<64x32xbf16>, vector<16x32xf32> -> vector<16x32xf32>
    %c0_i32_26 = arith.constant 0 : i32
    %48 = arith.cmpi eq, %arg2, %c0_i32_26 : i32
    %cst_27 = arith.constant 1.000000e+00 : f32
    %cst_28 = arith.constant 0.000000e+00 : f32
    %49 = arith.select %48, %cst_27, %cst_28 : f32
    %c0_29 = arith.constant 0 : index
    %c0_30 = arith.constant 0 : index
    %c0_31 = arith.constant 0 : index
    %50 = vector.load %arg11[%c0_29, %c0_30, %c0_31] : memref<1x1x32xf32, #tpu.memory_space<vmem>>, vector<1x1x32xf32>
    %51 = vector.shape_cast %50 : vector<1x1x32xf32> to vector<1x32xf32>
    %52 = vector.broadcast %49 : f32 to vector<1x32xf32>
    %53 = arith.mulf %52, %51 : vector<1x32xf32>
    %54 = vector.broadcast %53 : vector<1x32xf32> to vector<16x32xf32>
    %55 = arith.addf %47, %54 : vector<16x32xf32>
    %c0_32 = arith.constant 0 : index
    %c0_33 = arith.constant 0 : index
    %c0_34 = arith.constant 0 : index
    %56 = vector.load %arg5[%c0_32, %c0_33, %c0_34] : memref<1x16x1xf32, #tpu.memory_space<vmem>>, vector<1x16x1xf32>
    %57 = vector.shape_cast %56 : vector<1x16x1xf32> to vector<16x1xf32>
    %c0_35 = arith.constant 0 : index
    %c0_36 = arith.constant 0 : index
    %58 = vector.load %arg13[%c0_35, %c0_36] : memref<16x32xf32, #tpu.memory_space<vmem>>, vector<16x32xf32>
    %59 = vector.broadcast %57 : vector<16x1xf32> to vector<16x32xf32>
    %60 = arith.mulf %59, %55 : vector<16x32xf32>
    %61 = arith.addf %58, %60 : vector<16x32xf32>
    %c0_37 = arith.constant 0 : index
    %c0_38 = arith.constant 0 : index
    %62 = vector.load %arg13[%c0_37, %c0_38] : memref<16x32xf32, #tpu.memory_space<vmem>>, vector<16x32xf32>
    tpu.vector_store %arg13[%c0_37, %c0_38], %61 {strides = array<i32>} : memref<16x32xf32, #tpu.memory_space<vmem>>, vector<16x32xf32>,
    %c3_i32 = arith.constant 3 : i32
    %63 = arith.cmpi eq, %arg1, %c3_i32 : i32
    %c0_i32_39 = arith.constant 0 : i32
    %64 = arith.cmpi eq, %arg2, %c0_i32_39 : i32
    %65 = arith.andi %63, %64 : i1
    %66 = arith.extui %65 : i1 to i32
    %c0_i32_40 = arith.constant 0 : i32
    %67 = arith.cmpi ne, %66, %c0_i32_40 : i32
    scf.if %67 {
      %c0_41 = arith.constant 0 : index
      %c0_42 = arith.constant 0 : index
      %68 = vector.load %arg13[%c0_41, %c0_42] : memref<16x32xf32, #tpu.memory_space<vmem>>, vector<16x32xf32>
      %c0_43 = arith.constant 0 : index
      %c0_44 = arith.constant 0 : index
      %69 = vector.load %arg12[%c0_43, %c0_44] : memref<16x32xf32, #tpu.memory_space<vmem>>, vector<16x32xf32>
      tpu.vector_store %arg12[%c0_43, %c0_44], %68 {strides = array<i32>} : memref<16x32xf32, #tpu.memory_space<vmem>>, vector<16x32xf32>,
    } else {
    }
    return
  }
  func.func @transform_0(%arg0: i32, %arg1: i32, %arg2: i32) -> (i32, i32) {
    %c0_i32 = arith.constant 0 : i32
    %c0_i32_0 = arith.constant 0 : i32
    return %arg0, %c0_i32 : i32, i32
  }
  func.func @transform_1(%arg0: i32, %arg1: i32, %arg2: i32) -> (i32, i32) {
    %c0_i32 = arith.constant 0 : i32
    %c0_i32_0 = arith.constant 0 : i32
    %c0_i32_1 = arith.constant 0 : i32
    return %c0_i32, %c0_i32_0 : i32, i32
  }
  func.func @transform_2(%arg0: i32, %arg1: i32, %arg2: i32) -> (i32, i32, i32) {
    %c0_i32 = arith.constant 0 : i32
    %c0_i32_0 = arith.constant 0 : i32
    return %arg1, %arg0, %c0_i32 : i32, i32, i32
  }
  func.func @transform_3(%arg0: i32, %arg1: i32, %arg2: i32) -> (i32, i32, i32) {
    %c0_i32 = arith.constant 0 : i32
    %c0_i32_0 = arith.constant 0 : i32
    return %arg1, %arg2, %c0_i32 : i32, i32, i32
  }
  func.func @transform_4(%arg0: i32, %arg1: i32, %arg2: i32) -> (i32, i32, i32) {
    %c0_i32 = arith.constant 0 : i32
    %c0_i32_0 = arith.constant 0 : i32
    return %arg1, %c0_i32, %arg2 : i32, i32, i32
  }
  func.func @transform_5(%arg0: i32, %arg1: i32, %arg2: i32) -> (i32, i32, i32) {
    %c0_i32 = arith.constant 0 : i32
    %c0_i32_0 = arith.constant 0 : i32
    return %arg1, %arg2, %c0_i32 : i32, i32, i32
  }
  func.func @transform_6(%arg0: i32, %arg1: i32, %arg2: i32) -> (i32, i32, i32) {
    %c0_i32 = arith.constant 0 : i32
    %c0_i32_0 = arith.constant 0 : i32
    return %arg1, %c0_i32, %arg2 : i32, i32, i32
  }
  func.func @transform_7(%arg0: i32, %arg1: i32, %arg2: i32) -> (i32, i32, i32) {
    %c0_i32 = arith.constant 0 : i32
    %c0_i32_0 = arith.constant 0 : i32
    return %arg1, %arg2, %c0_i32 : i32, i32, i32
  }
  func.func @transform_8(%arg0: i32, %arg1: i32, %arg2: i32) -> (i32, i32, i32) {
    %c0_i32 = arith.constant 0 : i32
    %c0_i32_0 = arith.constant 0 : i32
    %c0_i32_1 = arith.constant 0 : i32
    return %arg1, %c0_i32, %c0_i32_0 : i32, i32, i32
  }
  func.func @transform_9(%arg0: i32, %arg1: i32, %arg2: i32) -> (i32, i32) {
    %c0_i32 = arith.constant 0 : i32
    %c0_i32_0 = arith.constant 0 : i32
    return %arg0, %c0_i32 : i32, i32
  }
}

module attributes {stable_mosaic.version = 11 : i64} {
  func.func @_rmsnorm_tied_head_kernel(%arg0: i32, %arg1: i32, %arg2: memref<16x32xf32, #tpu.memory_space<vmem>>, %arg3: memref<1x32xf32, #tpu.memory_space<vmem>>, %arg4: memref<128x32xf32, #tpu.memory_space<vmem>>, %arg5: memref<16x128xf32, #tpu.memory_space<vmem>>) attributes {dimension_semantics = [#tpu.dimension_semantics<parallel>, #tpu.dimension_semantics<parallel>], iteration_bounds = array<i64: 1, 1>, scalar_prefetch = 0 : i64, scratch_operands = 0 : i64, tpu.core_type = #tpu.core_type<tc>, window_params = [{transform_indices = @transform_0, window_bounds = array<i64: 16, 32>}, {pipeline_mode = #tpu.pipeline_mode<synchronous>, transform_indices = @transform_1, window_bounds = array<i64: 1, 32>}, {transform_indices = @transform_2, window_bounds = array<i64: 128, 32>}, {transform_indices = @transform_3, window_bounds = array<i64: 16, 128>}]} {
    %c0 = arith.constant 0 : index
    %c0_0 = arith.constant 0 : index
    %0 = vector.load %arg2[%c0, %c0_0] : memref<16x32xf32, #tpu.memory_space<vmem>>, vector<16x32xf32>
    %1 = arith.mulf %0, %0 : vector<16x32xf32>
    %cst = arith.constant dense<0.000000e+00> : vector<16xf32>
    %2 = vector.multi_reduction <add>, %1, %cst [1] : vector<16x32xf32> to vector<16xf32>
    %3 = vector.shape_cast %2 : vector<16xf32> to vector<16x1xf32>
    %cst_1 = arith.constant 3.200000e+01 : f32
    %4 = vector.broadcast %cst_1 : f32 to vector<16x1xf32>
    %5 = arith.divf %3, %4 : vector<16x1xf32>
    %cst_2 = arith.constant 9.99999974E-6 : f32
    %6 = vector.broadcast %cst_2 : f32 to vector<16x1xf32>
    %7 = arith.addf %5, %6 : vector<16x1xf32>
    %8 = math.rsqrt %7 : vector<16x1xf32>
    %9 = vector.broadcast %8 : vector<16x1xf32> to vector<16x32xf32>
    %10 = arith.mulf %0, %9 : vector<16x32xf32>
    %c0_3 = arith.constant 0 : index
    %c0_4 = arith.constant 0 : index
    %11 = vector.load %arg3[%c0_3, %c0_4] : memref<1x32xf32, #tpu.memory_space<vmem>>, vector<1x32xf32>
    %12 = vector.broadcast %11 : vector<1x32xf32> to vector<16x32xf32>
    %13 = arith.mulf %10, %12 : vector<16x32xf32>
    %c0_5 = arith.constant 0 : index
    %c0_6 = arith.constant 0 : index
    %14 = vector.load %arg4[%c0_5, %c0_6] : memref<128x32xf32, #tpu.memory_space<vmem>>, vector<128x32xf32>
    %15 = arith.truncf %14 : vector<128x32xf32> to vector<128x32xbf16>
    %16 = arith.truncf %13 : vector<16x32xf32> to vector<16x32xbf16>
    %cst_7 = arith.constant dense<0.000000e+00> : vector<16x128xf32>
    %17 = tpu.matmul %16, %15, %cst_7 {dimension_numbers = #tpu.dot_dimension_numbers<[1], [1], [0], [0], [0, 0, 1, 0], [], []>} : vector<16x32xbf16>, vector<128x32xbf16>, vector<16x128xf32> -> vector<16x128xf32>
    %c0_8 = arith.constant 0 : index
    %c0_9 = arith.constant 0 : index
    %18 = vector.load %arg5[%c0_8, %c0_9] : memref<16x128xf32, #tpu.memory_space<vmem>>, vector<16x128xf32>
    tpu.vector_store %arg5[%c0_8, %c0_9], %17 {strides = array<i32>} : memref<16x128xf32, #tpu.memory_space<vmem>>, vector<16x128xf32>,
    return
  }
  func.func @transform_0(%arg0: i32, %arg1: i32) -> (i32, i32) {
    %c0_i32 = arith.constant 0 : i32
    %c0_i32_0 = arith.constant 0 : i32
    return %arg0, %c0_i32 : i32, i32
  }
  func.func @transform_1(%arg0: i32, %arg1: i32) -> (i32, i32) {
    %c0_i32 = arith.constant 0 : i32
    %c0_i32_0 = arith.constant 0 : i32
    %c0_i32_1 = arith.constant 0 : i32
    return %c0_i32, %c0_i32_0 : i32, i32
  }
  func.func @transform_2(%arg0: i32, %arg1: i32) -> (i32, i32) {
    %c0_i32 = arith.constant 0 : i32
    %c0_i32_0 = arith.constant 0 : i32
    return %arg1, %c0_i32 : i32, i32
  }
  func.func @transform_3(%arg0: i32, %arg1: i32) -> (i32, i32) {
    %c0_i32 = arith.constant 0 : i32
    return %arg0, %arg1 : i32, i32
  }
}

</mosaic_0001>

<llo_original>
// kernel: moegpt_forward.11
$region0: #{moegpt_forward.11}
  #allocation0 [shape = 'u32[]', space=smem, size = 0x4, offset = 0x4, fixed_abs, tag = 'smem constant byte address 0x4 - core index']
  #allocation1 [shape = 'u32[72,128]{1,0:T(1,128)}', space=vmem, size = 0x9000, scoped, tag = 'internal scratch']
  %s0 = inlined_call_operand.vmem [shape: f32[16,32], index: 0, kind: input, shape index: {}]
  %s1 = inlined_call_operand.vmem [shape: f32[1,32], index: 1, kind: input, shape index: {}]
  %s2 = inlined_call_operand.vmem [shape: f32[32,96], index: 2, kind: input, shape index: {}]
  %s3 = inlined_call_operand.vmem [shape: f32[1,96], index: 3, kind: input, shape index: {}]
  %s4 = inlined_call_operand.vmem [shape: f32[16,96], index: 4, kind: output, shape index: {}]
  %s5 = sld [smem:[#allocation0]]
  $region26: #{moegpt_forward.11} parent=0
    _
  %s7 = ssub.s32 1, %s5
  %s8 = scalar_select 0, %s7, %s5
  // Predicated region
  $region2: #{moegpt_forward.11} parent=0 // pred_check
    _
  $region3: #{moegpt_forward.11} parent=0 // pred_check_branch
    %10 = sbr.rel (0) target = $region5
  $region4: #{moegpt_forward.11} parent=0 // pred_region
    _
  $region5: #{moegpt_forward.11} parent=0 // pred_fallthru
    _
  // Predicated region
  $region6: #{moegpt_forward.11} parent=0 // pred_check
    _
  $region7: #{moegpt_forward.11} parent=0 // pred_check_branch
    %12 = sbr.rel (0) target = $region9
  $region8: #{moegpt_forward.11} parent=0 // pred_region
    _
  $region9: #{moegpt_forward.11} parent=0 // pred_fallthru
    _
  // Predicated region
  $region10: #{moegpt_forward.11} parent=0 // pred_check
    _
  $region11: #{moegpt_forward.11} parent=0 // pred_check_branch
    %14 = sbr.rel (0) target = $region13
  $region12: #{moegpt_forward.11} parent=0 // pred_region
    _
  $region13: #{moegpt_forward.11} parent=0 // pred_fallthru
    _
  // Predicated region
  $region14: #{moegpt_forward.11} parent=0 // pred_check
    _
  $region15: #{moegpt_forward.11} parent=0 // pred_check_branch
    %16 = sbr.rel (0) target = $region17
  $region16: #{moegpt_forward.11} parent=0 // pred_region
    _
  $region17: #{moegpt_forward.11} parent=0 // pred_fallthru
    _
  %v18 = vld [vmem:[%s0] sm:$0xff]
  %v19 = vld [vmem:[%s0 + $0x8] sm:$0xff]
  %v20 = vmul.f32 %v18, %v18
  %v21 = vmul.f32 %v19, %v19
  %vm22 = vcmask 261120
  %v23 = vsel %vm22, %v20, 0.0
  %24 = vadd.xlane.f32.xlu0 %v23
  %v25 = vpop.xlane.xlu0 %24
  %v26 = vsel %vm22, %v21, 0.0
  %27 = vadd.xlane.f32.xlu0 %v26
  %v28 = vpop.xlane.xlu0 %27
  %v29 = vrcp.pop 32.0
  %v30 = vmul.f32 32.0, %v29
  %v31 = vsub.f32 1.0, %v30
  %v32 = vmul.f32 %v29, %v31
  %v33 = vadd.f32 %v29, %v32
  %vm34 = vweird.f32 %v29
  %v35 = vsel %vm34, %v29, %v33
  %v36 = vmul.f32 %v25, %v35
  %v37 = vmul.f32 %v28, %v35
  %v38 = vadd.f32 %v36, 1e-05
  %v39 = vadd.f32 %v37, 1e-05
  %v40 = vrsqrt.pop %v38
  %v41 = vmul.f32 %v40, %v38
  %v42 = vmul.f32 %v41, %v40
  %v43 = vmul.f32 0.5, %v42
  %v44 = vsub.f32 1.5, %v43
  %v45 = vmul.f32 %v40, %v44
  %vm46 = vweird.f32 %v38
  %vm47 = vweird.f32 %v40
  %vm48 = vmor %vm46, %vm47
  %v49 = vsel %vm48, %v40, %v45
  %v50 = vrsqrt.pop %v39
  %v51 = vmul.f32 %v50, %v39
  %v52 = vmul.f32 %v51, %v50
  %v53 = vmul.f32 0.5, %v52
  %v54 = vsub.f32 1.5, %v53
  %v55 = vmul.f32 %v50, %v54
  %vm56 = vweird.f32 %v39
  %vm57 = vweird.f32 %v50
  %vm58 = vmor %vm56, %vm57
  %v59 = vsel %vm58, %v50, %v55
  %v60 = vmul.f32 %v18, %v49
  %v61 = vmul.f32 %v19, %v59
  %v62 = vld [vmem:[%s1] sm:$0x1]
  %v64 = vperm.slane %v62, 0
  %v66 = vmul.f32 %v60, %v64
  %v67 = vmul.f32 %v61, %v64
  %v68 = vpack.c.bf16 %v67, %v66
  %v69 = vld [vmem:[%s2] sm:$0xff]
  %v70 = vld [vmem:[%s2 + $0x8] sm:$0xff]
  %v71 = vld [vmem:[%s2 + $0x10] sm:$0xff]
  %v72 = vld [vmem:[%s2 + $0x18] sm:$0xff]
  %v73 = vpack.c.bf16 %v70, %v69
  %v74 = vpack.c.bf16 %v72, %v71
  %v75 = vld [vmem:[%s3] sm:$0x1]
  %v77 = vperm.slane %v75, 0
  %v80 = vsel %vm22, %v68, 0
  %82 = vmatpush.bf16.msra.mxu0 0
  %83 = vmatpush.bf16.msra.mxu0 0
  %84 = vmatpush.bf16.msra.mxu0 0
  %85 = vmatpush.bf16.msra.mxu0 0
  %86 = vmatpush.bf16.msra.mxu0 0
  %87 = vmatpush.bf16.msra.mxu0 0
  %88 = vmatpush.bf16.msra.mxu0 %v74
  %89 = vmatpush.bf16.msra.mxu0 %v73
  %90 = vmatmul.bf16.gmra.mxu0 %v80
  %v91 = vpop.f32.mrf.mxu0
  %v92 = vadd.f32 %v77, %v91
  %v93 = vpop.f32.mrf.mxu0
  %v94 = vadd.f32 %v77, %v93
  %95 = vdwg.mxu0
  %vm96 = vcmask 785408
  %97 = vst.msk [vmem:[%s4] sm:$0xff] %vm96, %v92
  %98 = vst.msk [vmem:[%s4 + $0x8] sm:$0xff] %vm96, %v94
  // Predicated region
  $region18: #{moegpt_forward.11} parent=0 // pred_check
    _
  $region19: #{moegpt_forward.11} parent=0 // pred_check_branch
    %100 = sbr.rel (0) target = $region21
  $region20: #{moegpt_forward.11} parent=0 // pred_region
    _
  $region21: #{moegpt_forward.11} parent=0 // pred_fallthru
    _
  // Predicated region
  $region22: #{moegpt_forward.11} parent=0 // pred_check
    _
  $region23: #{moegpt_forward.11} parent=0 // pred_check_branch
    %102 = sbr.rel (0) target = $region25
  $region24: #{moegpt_forward.11} parent=0 // pred_region
    _
  $region25: #{moegpt_forward.11} parent=0 // pred_fallthru
    _

// kernel: moegpt_forward.13
$region0: #{moegpt_forward.13}
  #allocation0 [shape = 'u32[]', space=smem, size = 0x4, offset = 0x4, fixed_abs, tag = 'smem constant byte address 0x4 - core index']
  #allocation1 [shape = 'u32[72,128]{1,0:T(1,128)}', space=vmem, size = 0x9000, scoped, tag = 'internal scratch']
  #allocation2 [shape = 'f32[16,32]{1,0:T(8,128)}', space=vmem, size = 0x2000, scoped, tag = 'scratch operand']
  %s0 = inlined_call_operand.vmem [shape: f32[16,32], index: 0, kind: input, shape index: {}]
  %s1 = inlined_call_operand.vmem [shape: f32[32,32], index: 1, kind: input, shape index: {}]
  %s2 = inlined_call_operand.vmem [shape: f32[1,32], index: 2, kind: input, shape index: {}]
  %s3 = inlined_call_operand.vmem [shape: f32[16,32], index: 3, kind: output, shape index: {}]
  %s4 = sld [smem:[#allocation0]]
  $region30: #{moegpt_forward.13} parent=0
    _
  %s6 = ssub.s32 1, %s4
  %s7 = scalar_select 0, %s6, %s4
  // Predicated region
  $region2: #{moegpt_forward.13} parent=0 // pred_check
    _
  $region3: #{moegpt_forward.13} parent=0 // pred_check_branch
    %9 = sbr.rel (0) target = $region5
  $region4: #{moegpt_forward.13} parent=0 // pred_region
    _
  $region5: #{moegpt_forward.13} parent=0 // pred_fallthru
    _
  // Predicated region
  $region6: #{moegpt_forward.13} parent=0 // pred_check
    _
  $region7: #{moegpt_forward.13} parent=0 // pred_check_branch
    %11 = sbr.rel (0) target = $region9
  $region8: #{moegpt_forward.13} parent=0 // pred_region
    _
  $region9: #{moegpt_forward.13} parent=0 // pred_fallthru
    _
  // Predicated region
  $region10: #{moegpt_forward.13} parent=0 // pred_check
    _
  $region11: #{moegpt_forward.13} parent=0 // pred_check_branch
    %13 = sbr.rel (0) target = $region13
  $region12: #{moegpt_forward.13} parent=0 // pred_region
    _
  $region13: #{moegpt_forward.13} parent=0 // pred_fallthru
    _
  %p15 = scmp.eq.s32.totalorder 0, 0
  // Predicated region
  $region14: #{moegpt_forward.13} parent=0 // pred_check
    %p16 = pneg %p15
  $region15: #{moegpt_forward.13} parent=0 // pred_check_branch
    %18 = sbr.rel (%p16) target = $region17
  $region16: #{moegpt_forward.13} parent=0 // pred_region
    %vm19 = vcmask 261120
    %20 = vst.msk [vmem:[#allocation2] sm:$0xff] %vm19, 0.0
    %21 = vst.msk [vmem:[#allocation2 + $0x8] sm:$0xff] %vm19, 0.0
  $region17: #{moegpt_forward.13} parent=0 // pred_fallthru
    _
  %v22 = vld [vmem:[#allocation2] sm:$0xff]
  %v23 = vld [vmem:[#allocation2 + $0x8] sm:$0xff]
  %v24 = vld [vmem:[%s0] sm:$0xff]
  %v25 = vld [vmem:[%s0 + $0x8] sm:$0xff]
  %v26 = vpack.c.bf16 %v25, %v24
  %v27 = vld [vmem:[%s1] sm:$0xff]
  %v28 = vld [vmem:[%s1 + $0x8] sm:$0xff]
  %v29 = vld [vmem:[%s1 + $0x10] sm:$0xff]
  %v30 = vld [vmem:[%s1 + $0x18] sm:$0xff]
  %v31 = vpack.c.bf16 %v28, %v27
  %v32 = vpack.c.bf16 %v30, %v29
  %vm33 = vcmask 261120
  %v35 = vsel %vm33, %v26, 0
  %37 = vmatpush.bf16.msra.mxu0 0
  %38 = vmatpush.bf16.msra.mxu0 0
  %39 = vmatpush.bf16.msra.mxu0 0
  %40 = vmatpush.bf16.msra.mxu0 0
  %41 = vmatpush.bf16.msra.mxu0 0
  %42 = vmatpush.bf16.msra.mxu0 0
  %43 = vmatpush.bf16.msra.mxu0 %v32
  %44 = vmatpush.bf16.msra.mxu0 %v31
  %45 = vmatmul.bf16.gmra.mxu0 %v35
  %v46 = vpop.f32.mrf.mxu0
  %v47 = vadd.f32 0.0, %v46
  %v48 = vpop.f32.mrf.mxu0
  %v49 = vadd.f32 0.0, %v48
  %50 = vdwg.mxu0
  %v51 = vadd.f32 %v22, %v47
  %v52 = vadd.f32 %v23, %v49
  %53 = vst.msk [vmem:[#allocation2] sm:$0xff] %vm33, %v51
  %54 = vst.msk [vmem:[#allocation2 + $0x8] sm:$0xff] %vm33, %v52
  // Predicated region
  $region18: #{moegpt_forward.13} parent=0 // pred_check
    %p55 = pneg %p15
  $region19: #{moegpt_forward.13} parent=0 // pred_check_branch
    %57 = sbr.rel (%p55) target = $region21
  $region20: #{moegpt_forward.13} parent=0 // pred_region
    %v58 = vld [vmem:[#allocation2] sm:$0xff]
    %v59 = vld [vmem:[#allocation2 + $0x8] sm:$0xff]
    %v60 = vld [vmem:[%s2] sm:$0x1]
    %v62 = vperm.slane %v60, 0
    %v64 = vadd.f32 %v58, %v62
    %v65 = vadd.f32 %v59, %v62
    %66 = vst.msk [vmem:[%s3] sm:$0xff] %vm33, %v64
    %67 = vst.msk [vmem:[%s3 + $0x8] sm:$0xff] %vm33, %v65
  $region21: #{moegpt_forward.13} parent=0 // pred_fallthru
    _
  // Predicated region
  $region22: #{moegpt_forward.13} parent=0 // pred_check
    _
  $region23: #{moegpt_forward.13} parent=0 // pred_check_branch
    %69 = sbr.rel (0) target = $region25
  $region24: #{moegpt_forward.13} parent=0 // pred_region
    _
  $region25: #{moegpt_forward.13} parent=0 // pred_fallthru
    _
  // Predicated region
  $region26: #{moegpt_forward.13} parent=0 // pred_check
    _
  $region27: #{moegpt_forward.13} parent=0 // pred_check_branch
    %71 = sbr.rel (0) target = $region29
  $region28: #{moegpt_forward.13} parent=0 // pred_region
    _
  $region29: #{moegpt_forward.13} parent=0 // pred_fallthru
    _

// kernel: moegpt_forward.12
$region0: #{moegpt_forward.12}
  #allocation0 [shape = 'u32[]', space=smem, size = 0x4, offset = 0x4, fixed_abs, tag = 'smem constant byte address 0x4 - core index']
  #allocation1 [shape = 'u32[72,128]{1,0:T(1,128)}', space=vmem, size = 0x9000, scoped, tag = 'internal scratch']
  #allocation2 [shape = 'f32[2,8,1]{2,1,0:T(8,128)}', space=vmem, size = 0x2000, scoped, tag = 'scratch operand']
  #allocation3 [shape = 'f32[2,8,1]{2,1,0:T(8,128)}', space=vmem, size = 0x2000, scoped, tag = 'scratch operand']
  #allocation4 [shape = 'f32[2,8,16]{2,1,0:T(8,128)}', space=vmem, size = 0x2000, scoped, tag = 'scratch operand']
  %s0 = inlined_call_operand.vmem [shape: f32[2,2,8,16], index: 0, kind: input, shape index: {}]
  %s1 = inlined_call_operand.vmem [shape: f32[2,2,8,16], index: 1, kind: input, shape index: {}]
  %s2 = inlined_call_operand.vmem [shape: f32[2,2,8,16], index: 2, kind: input, shape index: {}]
  %s3 = inlined_call_operand.vmem [shape: f32[2,2,8,16], index: 3, kind: output, shape index: {}]
  %s4 = sld [smem:[#allocation0]]
  $region57: #{moegpt_forward.12} parent=0
    _
  %s6 = ssub.s32 1, %s4
  %s7 = scalar_select 0, %s6, %s4
  loop: start=0, step=1, limit=4
  $region2: #{moegpt_forward.12} parent=0 // loop_pre_header
    _
  $region3: #{moegpt_forward.12} parent=0 // loop_header
    %s9 = sphi 0, %s13
    %p10 = scmp.ge.s32.totalorder %s9, 4
    %s16 = sphi 0, %s35
    %s17 = sphi 0, %s31
    %s18 = sphi 0, %s27
    %s19 = sphi 0, %s16
    %s20 = sphi 0, %s17
    %s21 = sphi 0, %s18
    %s22 = sphi 0, %s19
    %s23 = sphi 0, %s20
    %s24 = sphi 0, %s21
    %s40 = sphi 0, %s42
    %s43 = sphi 0, %s40
    %s44 = sphi 0, %s43
    %s60 = sphi 0, %s44
    %s68 = sphi 0, %s70
    %s71 = sphi 0, %s68
    %s72 = sphi 0, %s71
    %s88 = sphi 0, %s72
    %s96 = sphi 0, %s98
    %s99 = sphi 0, %s96
    %s100 = sphi 0, %s99
    %s116 = sphi 0, %s100
    %s124 = sphi 0, %s126
    %s127 = sphi 0, %s124
    %s128 = sphi 0, %s127
    %s144 = sphi 0, %s128
  $region4: #{moegpt_forward.12} parent=0 // loop_header_branch
    %12 = sbr.rel (%p10) target = $region8
  $region5: #{moegpt_forward.12} parent=0 // loop_body
    %s14 = ssub.s32 %s9, 1
    %s15 = ssub.s32 %s9, 2
    %s25 = sadd.s32 1, %s18
    %p26 = scmp.ge.s32.totalorder %s25, 1
    %s27 = scalar_select %p26, 0, %s25
    %s28 = sadd.s32 1, %s17
    %s29 = scalar_select %p26, %s28, %s17
    %p30 = scmp.ge.s32.totalorder %s29, 1
    %s31 = scalar_select %p30, 0, %s29
    %s32 = sadd.s32 1, %s16
    %s33 = scalar_select %p30, %s32, %s16
    %p34 = scmp.ge.s32.totalorder %s33, 2
    %s35 = scalar_select %p34, 0, %s33
    %s36 = ssub.s32 %s16, %s35
    %s37 = ssub.s32 %s17, %s31
    %s38 = sor.u32 %s36, %s37
    %p39 = scmp.eq.s32.totalorder %s38, 0
    %s41 = sadd.s32 %s40, 1
    %s42 = scalar_select %p39, %s40, %s41
    %p45 = pneg %p39
    %p46 = scmp.eq.s32.totalorder %s9, 1
    %p47 = por %p45, %p46
    %p48 = scmp.ne.s32.totalorder %s40, %s43
    %p49 = scmp.eq.s32.totalorder %s9, 0
    %p50 = por %p48, %p49
    %p51 = scmp.ne.s32.totalorder %s40, %s43
    %p52 = scmp.eq.s32.totalorder %s14, 1
    %p53 = por %p51, %p52
    %p54 = scmp.ne.s32.totalorder %s43, %s44
    %p55 = scmp.eq.s32.totalorder %s14, 0
    %p56 = por %p54, %p55
    %p57 = scmp.ne.s32.totalorder %s43, %s44
    %p58 = scmp.eq.s32.totalorder %s15, 1
    %p59 = por %p57, %p58
    %p61 = scmp.ne.s32.totalorder %s44, %s60
    %p62 = scmp.eq.s32.totalorder %s15, 0
    %p63 = por %p61, %p62
    %s64 = ssub.s32 %s16, %s35
    %s65 = ssub.s32 %s18, %s27
    %s66 = sor.u32 %s64, %s65
    %p67 = scmp.eq.s32.totalorder %s66, 0
    %s69 = sadd.s32 %s68, 1
    %s70 = scalar_select %p67, %s68, %s69
    %p73 = pneg %p67
    %p74 = scmp.eq.s32.totalorder %s9, 1
    %p75 = por %p73, %p74
    %p76 = scmp.ne.s32.totalorder %s68, %s71
    %p77 = scmp.eq.s32.totalorder %s9, 0
    %p78 = por %p76, %p77
    %p79 = scmp.ne.s32.totalorder %s68, %s71
    %p80 = scmp.eq.s32.totalorder %s14, 1
    %p81 = por %p79, %p80
    %p82 = scmp.ne.s32.totalorder %s71, %s72
    %p83 = scmp.eq.s32.totalorder %s14, 0
    %p84 = por %p82, %p83
    %p85 = scmp.ne.s32.totalorder %s71, %s72
    %p86 = scmp.eq.s32.totalorder %s15, 1
    %p87 = por %p85, %p86
    %p89 = scmp.ne.s32.totalorder %s72, %s88
    %p90 = scmp.eq.s32.totalorder %s15, 0
    %p91 = por %p89, %p90
    %s92 = ssub.s32 %s16, %s35
    %s93 = ssub.s32 %s18, %s27
    %s94 = sor.u32 %s92, %s93
    %p95 = scmp.eq.s32.totalorder %s94, 0
    %s97 = sadd.s32 %s96, 1
    %s98 = scalar_select %p95, %s96, %s97
    %p101 = pneg %p95
    %p102 = scmp.eq.s32.totalorder %s9, 1
    %p103 = por %p101, %p102
    %p104 = scmp.ne.s32.totalorder %s96, %s99
    %p105 = scmp.eq.s32.totalorder %s9, 0
    %p106 = por %p104, %p105
    %p107 = scmp.ne.s32.totalorder %s96, %s99
    %p108 = scmp.eq.s32.totalorder %s14, 1
    %p109 = por %p107, %p108
    %p110 = scmp.ne.s32.totalorder %s99, %s100
    %p111 = scmp.eq.s32.totalorder %s14, 0
    %p112 = por %p110, %p111
    %p113 = scmp.ne.s32.totalorder %s99, %s100
    %p114 = scmp.eq.s32.totalorder %s15, 1
    %p115 = por %p113, %p114
    %p117 = scmp.ne.s32.totalorder %s100, %s116
    %p118 = scmp.eq.s32.totalorder %s15, 0
    %p119 = por %p117, %p118
    %s120 = ssub.s32 %s16, %s35
    %s121 = ssub.s32 %s17, %s31
    %s122 = sor.u32 %s120, %s121
    %p123 = scmp.eq.s32.totalorder %s122, 0
    %s125 = sadd.s32 %s124, 1
    %s126 = scalar_select %p123, %s124, %s125
    %p129 = pneg %p123
    %p130 = scmp.eq.s32.totalorder %s9, 1
    %p131 = por %p129, %p130
    %p132 = scmp.ne.s32.totalorder %s124, %s127
    %p133 = scmp.eq.s32.totalorder %s9, 0
    %p134 = por %p132, %p133
    %p135 = scmp.ne.s32.totalorder %s124, %s127
    %p136 = scmp.eq.s32.totalorder %s14, 1
    %p137 = por %p135, %p136
    %p138 = scmp.ne.s32.totalorder %s127, %s128
    %p139 = scmp.eq.s32.totalorder %s14, 0
    %p140 = por %p138, %p139
    %p141 = scmp.ne.s32.totalorder %s127, %s128
    %p142 = scmp.eq.s32.totalorder %s15, 1
    %p143 = por %p141, %p142
    %p145 = scmp.ne.s32.totalorder %s128, %s144
    %p146 = scmp.eq.s32.totalorder %s15, 0
    %p147 = por %p145, %p146
    %p148 = scmp.le.s32.totalorder 1, %s9
    %p149 = scmp.lt.s32.totalorder %s9, 3
    %p150 = pnand %p148, %p149
    %p151 = pneg %p150
    // Predicated region
    $region9: #{moegpt_forward.12} parent=5 // pred_check
      _
    $region10: #{moegpt_forward.12} parent=5 // pred_check_branch
      %153 = sbr.rel (%p150) target = $region12
    $region11: #{moegpt_forward.12} parent=5 // pred_region
      %s154 = ssub.s32 %s9, 1
    $region12: #{moegpt_forward.12} parent=5 // pred_fallthru
      _
    %p155 = scmp.lt.s32.totalorder %s9, 2
    // Predicated region
    $region13: #{moegpt_forward.12} parent=5 // pred_check
      %p156 = pneg %p155
    $region14: #{moegpt_forward.12} parent=5 // pred_check_branch
      %158 = sbr.rel (%p156) target = $region16
    $region15: #{moegpt_forward.12} parent=5 // pred_region
      // Predicated region
      $region17: #{moegpt_forward.12} parent=15 // pred_check
        %p159 = pneg %p50
      $region18: #{moegpt_forward.12} parent=15 // pred_check_branch
        %161 = sbr.rel (%p159) target = $region20
      $region19: #{moegpt_forward.12} parent=15 // pred_region
        %p162 = scmp.lt.s32.totalorder %s16, 1
        %s163 = scalar_select %p162, %s16, 1
        %p164 = scmp.lt.s32.totalorder %s17, 0
        %s165 = scalar_select %p164, %s17, 0
        %s166 = smul.addr %s163, 2
        %s167 = sadd.s32 %s165, %s166
        %s168 = smul.addr %s167, 8
        %s169 = scalar_lea.vmem %s0, %s168
      $region20: #{moegpt_forward.12} parent=15 // pred_fallthru
        _
      // Predicated region
      $region21: #{moegpt_forward.12} parent=15 // pred_check
        %p170 = pneg %p78
      $region22: #{moegpt_forward.12} parent=15 // pred_check_branch
        %172 = sbr.rel (%p170) target = $region24
      $region23: #{moegpt_forward.12} parent=15 // pred_region
        %p173 = scmp.lt.s32.totalorder %s16, 1
        %s174 = scalar_select %p173, %s16, 1
        %p175 = scmp.lt.s32.totalorder %s18, 0
        %s176 = scalar_select %p175, %s18, 0
        %s177 = smul.addr %s174, 2
        %s178 = sadd.s32 %s176, %s177
        %s179 = smul.addr %s178, 8
        %s180 = scalar_lea.vmem %s1, %s179
      $region24: #{moegpt_forward.12} parent=15 // pred_fallthru
        _
      // Predicated region
      $region25: #{moegpt_forward.12} parent=15 // pred_check
        %p181 = pneg %p106
      $region26: #{moegpt_forward.12} parent=15 // pred_check_branch
        %183 = sbr.rel (%p181) target = $region28
      $region27: #{moegpt_forward.12} parent=15 // pred_region
        %p184 = scmp.lt.s32.totalorder %s16, 1
        %s185 = scalar_select %p184, %s16, 1
        %p186 = scmp.lt.s32.totalorder %s18, 0
        %s187 = scalar_select %p186, %s18, 0
        %s188 = smul.addr %s185, 2
        %s189 = sadd.s32 %s187, %s188
        %s190 = smul.addr %s189, 8
        %s191 = scalar_lea.vmem %s2, %s190
      $region28: #{moegpt_forward.12} parent=15 // pred_fallthru
        _
    $region16: #{moegpt_forward.12} parent=5 // pred_fallthru
      _
    %p192 = scmp.le.s32.totalorder 1, %s9
    %p193 = scmp.lt.s32.totalorder %s9, 3
    %p194 = pnand %p192, %p193
    %p195 = pneg %p194
    // Predicated region
    $region29: #{moegpt_forward.12} parent=5 // pred_check
      _
    $region30: #{moegpt_forward.12} parent=5 // pred_check_branch
      %197 = sbr.rel (%p194) target = $region32
    $region31: #{moegpt_forward.12} parent=5 // pred_region
      %s198 = ssub.s32 %s9, 1
      %p199 = scmp.lt.s32.totalorder %s19, 1
      %s200 = scalar_select %p199, %s19, 1
      %p201 = scmp.lt.s32.totalorder %s20, 0
      %s202 = scalar_select %p201, %s20, 0
      %s203 = smul.addr %s200, 2
      %s204 = sadd.s32 %s202, %s203
      %s205 = smul.addr %s204, 8
      %s206 = scalar_lea.vmem %s0, %s205
      %p207 = pneg %p56
      %p208 = pneg %p53
      %p209 = scmp.lt.s32.totalorder %s19, 1
      %s210 = scalar_select %p209, %s19, 1
      %p211 = scmp.lt.s32.totalorder %s21, 0
      %s212 = scalar_select %p211, %s21, 0
      %s213 = smul.addr %s210, 2
      %s214 = sadd.s32 %s212, %s213
      %s215 = smul.addr %s214, 8
      %s216 = scalar_lea.vmem %s1, %s215
      %p217 = pneg %p84
      %p218 = pneg %p81
      %p219 = scmp.lt.s32.totalorder %s19, 1
      %s220 = scalar_select %p219, %s19, 1
      %p221 = scmp.lt.s32.totalorder %s21, 0
      %s222 = scalar_select %p221, %s21, 0
      %s223 = smul.addr %s220, 2
      %s224 = sadd.s32 %s222, %s223
      %s225 = smul.addr %s224, 8
      %s226 = scalar_lea.vmem %s2, %s225
      %p227 = pneg %p112
      %p228 = pneg %p109
      %p229 = pneg %p140
      %p230 = pneg %p137
      %p231 = scmp.lt.s32.totalorder %s19, 1
      %s232 = scalar_select %p231, %s19, 1
      %p233 = scmp.lt.s32.totalorder %s20, 0
      %s234 = scalar_select %p233, %s20, 0
      %s235 = smul.addr %s232, 2
      %s236 = sadd.s32 %s234, %s235
      %s237 = smul.addr %s236, 8
      %s238 = scalar_lea.vmem %s3, %s237
      %p239 = scmp.lt.s32.totalorder %s19, 1
      %s240 = scalar_select %p239, %s19, 1
      %p241 = scmp.lt.s32.totalorder %s20, 0
      %s242 = scalar_select %p241, %s20, 0
      %s243 = smul.addr %s240, 2
      %s244 = sadd.s32 %s242, %s243
      %s245 = smul.addr %s244, 8
      %s246 = scalar_lea.vmem %s0, %s245
      %p247 = scmp.lt.s32.totalorder %s19, 1
      %s248 = scalar_select %p247, %s19, 1
      %p249 = scmp.lt.s32.totalorder %s21, 0
      %s250 = scalar_select %p249, %s21, 0
      %s251 = smul.addr %s248, 2
      %s252 = sadd.s32 %s250, %s251
      %s253 = smul.addr %s252, 8
      %s254 = scalar_lea.vmem %s1, %s253
      %p255 = scmp.lt.s32.totalorder %s19, 1
      %s256 = scalar_select %p255, %s19, 1
      %p257 = scmp.lt.s32.totalorder %s21, 0
      %s258 = scalar_select %p257, %s21, 0
      %s259 = smul.addr %s256, 2
      %s260 = sadd.s32 %s258, %s259
      %s261 = smul.addr %s260, 8
      %s262 = scalar_lea.vmem %s2, %s261
      %p263 = scmp.lt.s32.totalorder %s19, 1
      %s264 = scalar_select %p263, %s19, 1
      %p265 = scmp.lt.s32.totalorder %s20, 0
      %s266 = scalar_select %p265, %s20, 0
      %s267 = smul.addr %s264, 2
      %s268 = sadd.s32 %s266, %s267
      %s269 = smul.addr %s268, 8
      %s270 = scalar_lea.vmem %s3, %s269
      %p272 = scmp.eq.s32.totalorder %s21, 0
      // Predicated region
      $region33: #{moegpt_forward.12} parent=31 // pred_check
        %p273 = pneg %p272
      $region34: #{moegpt_forward.12} parent=31 // pred_check_branch
        %275 = sbr.rel (%p273) target = $region36
      $region35: #{moegpt_forward.12} parent=31 // pred_region
        %vm276 = vcmask 7168
        %277 = vst.msk [vmem:[#allocation2] sm:$0xff] %vm276, -1e+30
        %278 = vst.msk [vmem:[#allocation2 + $0x8] sm:$0xff] %vm276, -1e+30
        %279 = vst.msk [vmem:[#allocation3] sm:$0xff] %vm276, 0.0
        %280 = vst.msk [vmem:[#allocation3 + $0x8] sm:$0xff] %vm276, 0.0
        %vm281 = vcmask 130048
        %282 = vst.msk [vmem:[#allocation4] sm:$0xff] %vm281, 0.0
        %283 = vst.msk [vmem:[#allocation4 + $0x8] sm:$0xff] %vm281, 0.0
      $region36: #{moegpt_forward.12} parent=31 // pred_fallthru
        _
      %s284 = smul.u32 %s20, 8
      %s285 = smul.u32 %s21, 8
      %s286 = sadd.s32 %s284, 8
      %p287 = scmp.lt.s32.totalorder %s285, %s286
      // Predicated region
      $region37: #{moegpt_forward.12} parent=31 // pred_check
        %p288 = pneg %p287
      $region38: #{moegpt_forward.12} parent=31 // pred_check_branch
        %290 = sbr.rel (%p288) target = $region40
      $region39: #{moegpt_forward.12} parent=31 // pred_region
        %v291 = vld [vmem:[%s246] sm:$0xff]
        %v292 = vld [vmem:[%s246 + $0x8] sm:$0xff]
        %v293 = vpack.c.bf16 %v291, %v291
        %v294 = vpack.c.bf16 %v292, %v292
        %v295 = vld [vmem:[%s254] sm:$0xff]
        %v296 = vld [vmem:[%s254 + $0x8] sm:$0xff]
        %v297 = vpack.c.bf16 %v295, %v295
        %v298 = vpack.c.bf16 %v296, %v296
        %vm299 = vcmask 130048
        %v301 = vsel %vm299, %v293, 0
        %v304 = vsel %vm299, %v297, 0
        %306 = vmatpush.bf16.xpose.msra.mxu0 0
        %307 = vmatpush.bf16.xpose.msra.mxu0 0
        %308 = vmatpush.bf16.xpose.msra.mxu0 0
        %309 = vmatpush.bf16.xpose.msra.mxu0 0
        %310 = vmatpush.bf16.xpose.msra.mxu0 0
        %311 = vmatpush.bf16.xpose.msra.mxu0 0
        %312 = vmatpush.bf16.xpose.msra.mxu0 0
        %313 = vmatpush.bf16.xpose.msra.mxu0 %v304
        %314 = vmatmul.bf16.gmra.mxu0 %v301
        %v315 = vpop.f32.mrf.mxu0
        %v316 = vadd.f32 0.0, %v315
        %v317 = vpop.f32.mrf.mxu0
        %318 = vdwg.mxu0
        %v320 = vsel %vm299, %v294, 0
        %v323 = vsel %vm299, %v298, 0
        %325 = vmatpush.bf16.xpose.msra.mxu0 0
        %326 = vmatpush.bf16.xpose.msra.mxu0 0
        %327 = vmatpush.bf16.xpose.msra.mxu0 0
        %328 = vmatpush.bf16.xpose.msra.mxu0 0
        %329 = vmatpush.bf16.xpose.msra.mxu0 0
        %330 = vmatpush.bf16.xpose.msra.mxu0 0
        %331 = vmatpush.bf16.xpose.msra.mxu0 0
        %332 = vmatpush.bf16.xpose.msra.mxu0 %v323
        %333 = vmatmul.bf16.gmra.mxu0 %v320
        %v334 = vpop.f32.mrf.mxu0
        %v335 = vadd.f32 0.0, %v334
        %v336 = vpop.f32.mrf.mxu0
        %337 = vdwg.mxu0
        %v338 = vmul.f32 %v316, 0.25
        %v339 = vmul.f32 %v335, 0.25
        %v340 = vlaneseq
        %v341 = vshrl.u32 %v340, 7
        %v342 = vstv %s284
        %v343 = vadd.s32 %v342, %v341
        %v344 = vlaneseq
        %v345 = vand.u32 %v344, 127
        %v346 = vstv %s285
        %v347 = vadd.s32 %v346, %v345
        %vm348 = vcmp.le.s32.totalorder %v347, %v343
        %v349 = vsel %vm348, 1, 0
        %vm350 = vcmp.eq.s32.totalorder %v349, 1
        %v351 = vsel %vm350, %v338, -1e+30
        %v352 = vsel %vm350, %v339, -1e+30
        %v353 = vld [vmem:[#allocation2] sm:$0xff]
        %v354 = vld [vmem:[#allocation2 + $0x8] sm:$0xff]
        %vm355 = vcmask 64512
        %v356 = vsel %vm355, %v351, -inf
        %357 = vmax.xlane.f32.xlu0 %v356
        %v358 = vpop.xlane.xlu0 %357
        %v359 = vsel %vm355, %v352, -inf
        %360 = vmax.xlane.f32.xlu0 %v359
        %v361 = vpop.xlane.xlu0 %360
        %v362 = vmax.f32 %v353, %v358
        %v363 = vmax.f32 %v354, %v361
        %v364 = vsub.f32 %v353, %v362
        %v365 = vsub.f32 %v354, %v363
        %v366 = vmul.f32 %v364, 1.442695
        %v367 = vpow.pop %v366
        %v368 = vmul.f32 %v365, 1.442695
        %v369 = vpow.pop %v368
        %371 = vset.pattern.permute.xlu0 0
        %372 = vperm.xlu0 %371, %v362
        %v373 = vpop.permute.xlu0 %372
        %376 = vset.pattern.permute.xlu0 0
        %377 = vperm.xlu0 %376, %v363
        %v378 = vpop.permute.xlu0 %377
        %v380 = vsub.f32 %v351, %v373
        %v381 = vsub.f32 %v352, %v378
        %v382 = vmul.f32 %v380, 1.442695
        %v383 = vpow.pop %v382
        %v384 = vmul.f32 %v381, 1.442695
        %v385 = vpow.pop %v384
        %v386 = vld [vmem:[#allocation3] sm:$0xff]
        %v387 = vld [vmem:[#allocation3 + $0x8] sm:$0xff]
        %v388 = vmul.f32 %v367, %v386
        %v389 = vmul.f32 %v369, %v387
        %v390 = vsel %vm355, %v383, 0.0
        %391 = vadd.xlane.f32.xlu0 %v390
        %v392 = vpop.xlane.xlu0 %391
        %v393 = vsel %vm355, %v385, 0.0
        %394 = vadd.xlane.f32.xlu0 %v393
        %v395 = vpop.xlane.xlu0 %394
        %v396 = vadd.f32 %v388, %v392
        %v397 = vadd.f32 %v389, %v395
        %vm398 = vcmask 7168
        %399 = vst.msk [vmem:[#allocation3] sm:$0xff] %vm398, %v396
        %400 = vst.msk [vmem:[#allocation3 + $0x8] sm:$0xff] %vm398, %v397
        %v401 = vpack.c.bf16 %v383, %v383
        %v402 = vpack.c.bf16 %v385, %v385
        %v403 = vld [vmem:[%s262] sm:$0xff]
        %v404 = vld [vmem:[%s262 + $0x8] sm:$0xff]
        %v405 = vpack.c.bf16 %v403, %v403
        %v406 = vpack.c.bf16 %v404, %v404
        %v408 = vsel %vm355, %v401, 0
        %vm410 = vcmask 1043456
        %v412 = vsel %vm410, %v405, 0
        %414 = vmatpush.bf16.msra.mxu0 0
        %415 = vmatpush.bf16.msra.mxu0 0
        %416 = vmatpush.bf16.msra.mxu0 0
        %417 = vmatpush.bf16.msra.mxu0 0
        %418 = vmatpush.bf16.msra.mxu0 0
        %419 = vmatpush.bf16.msra.mxu0 0
        %420 = vmatpush.bf16.msra.mxu0 0
        %421 = vmatpush.bf16.msra.mxu0 %v412
        %422 = vmatmul.bf16.gmra.mxu0 %v408
        %v423 = vpop.f32.mrf.mxu0
        %v424 = vadd.f32 0.0, %v423
        %v425 = vpop.f32.mrf.mxu0
        %426 = vdwg.mxu0
        %v428 = vsel %vm355, %v402, 0
        %v431 = vsel %vm410, %v406, 0
        %433 = vmatpush.bf16.msra.mxu0 0
        %434 = vmatpush.bf16.msra.mxu0 0
        %435 = vmatpush.bf16.msra.mxu0 0
        %436 = vmatpush.bf16.msra.mxu0 0
        %437 = vmatpush.bf16.msra.mxu0 0
        %438 = vmatpush.bf16.msra.mxu0 0
        %439 = vmatpush.bf16.msra.mxu0 0
        %440 = vmatpush.bf16.msra.mxu0 %v431
        %441 = vmatmul.bf16.gmra.mxu0 %v428
        %v442 = vpop.f32.mrf.mxu0
        %v443 = vadd.f32 0.0, %v442
        %v444 = vpop.f32.mrf.mxu0
        %445 = vdwg.mxu0
        %v446 = vld [vmem:[#allocation4] sm:$0xff]
        %v447 = vld [vmem:[#allocation4 + $0x8] sm:$0xff]
        %449 = vset.pattern.permute.xlu0 0
        %450 = vperm.xlu0 %449, %v367
        %v451 = vpop.permute.xlu0 %450
        %454 = vset.pattern.permute.xlu0 0
        %455 = vperm.xlu0 %454, %v369
        %v456 = vpop.permute.xlu0 %455
        %v458 = vmul.f32 %v451, %v446
        %v459 = vmul.f32 %v456, %v447
        %v460 = vadd.f32 %v458, %v424
        %v461 = vadd.f32 %v459, %v443
        %462 = vst.msk [vmem:[#allocation4] sm:$0xff] %vm299, %v460
        %463 = vst.msk [vmem:[#allocation4 + $0x8] sm:$0xff] %vm299, %v461
        %464 = vst.msk [vmem:[#allocation2] sm:$0xff] %vm398, %v362
        %465 = vst.msk [vmem:[#allocation2 + $0x8] sm:$0xff] %vm398, %v363
      $region40: #{moegpt_forward.12} parent=31 // pred_fallthru
        _
      // Predicated region
      $region41: #{moegpt_forward.12} parent=31 // pred_check
        %p466 = pneg %p272
      $region42: #{moegpt_forward.12} parent=31 // pred_check_branch
        %468 = sbr.rel (%p466) target = $region44
      $region43: #{moegpt_forward.12} parent=31 // pred_region
        %v469 = vld [vmem:[#allocation4] sm:$0xff]
        %v470 = vld [vmem:[#allocation4 + $0x8] sm:$0xff]
        %v471 = vld [vmem:[#allocation3] sm:$0xff]
        %v472 = vld [vmem:[#allocation3 + $0x8] sm:$0xff]
        %v473 = vrcp.pop %v471
        %v474 = vmul.f32 %v471, %v473
        %v475 = vsub.f32 1.0, %v474
        %v476 = vmul.f32 %v473, %v475
        %v477 = vadd.f32 %v473, %v476
        %vm478 = vweird.f32 %v471
        %vm479 = vweird.f32 %v473
        %vm480 = vmor %vm478, %vm479
        %v481 = vsel %vm480, %v473, %v477
        %v482 = vand.u32 2147483647, %v471
        %vm483 = vcmp.eq.f32.partialorder %v482, 8.507059e+37
        %v484 = vand.u32 %v471, 2147483648
        %v485 = vor.u32 1.1754944e-38, %v484
        %v486 = vsel %vm483, %v485, %v481
        %v487 = vrcp.pop %v472
        %v488 = vmul.f32 %v472, %v487
        %v489 = vsub.f32 1.0, %v488
        %v490 = vmul.f32 %v487, %v489
        %v491 = vadd.f32 %v487, %v490
        %vm492 = vweird.f32 %v472
        %vm493 = vweird.f32 %v487
        %vm494 = vmor %vm492, %vm493
        %v495 = vsel %vm494, %v487, %v491
        %v496 = vand.u32 2147483647, %v472
        %vm497 = vcmp.eq.f32.partialorder %v496, 8.507059e+37
        %v498 = vand.u32 %v472, 2147483648
        %v499 = vor.u32 1.1754944e-38, %v498
        %v500 = vsel %vm497, %v499, %v495
        %502 = vset.pattern.permute.xlu0 0
        %503 = vperm.xlu0 %502, %v486
        %v504 = vpop.permute.xlu0 %503
        %507 = vset.pattern.permute.xlu0 0
        %508 = vperm.xlu0 %507, %v500
        %v509 = vpop.permute.xlu0 %508
        %v511 = vmul.f32 %v469, %v504
        %v512 = vmul.f32 %v470, %v509
        %vm513 = vcmask 130048
        %514 = vst.msk [vmem:[%s270] sm:$0xff] %vm513, %v511
        %515 = vst.msk [vmem:[%s270 + $0x8] sm:$0xff] %vm513, %v512
      $region44: #{moegpt_forward.12} parent=31 // pred_fallthru
        _
      %p516 = scmp.lt.s32.totalorder %s19, 1
      %s517 = scalar_select %p516, %s19, 1
      %p518 = scmp.lt.s32.totalorder %s20, 0
      %s519 = scalar_select %p518, %s20, 0
      %s520 = smul.addr %s517, 2
      %s521 = sadd.s32 %s519, %s520
      %s522 = smul.addr %s521, 8
      %s523 = scalar_lea.vmem %s3, %s522
      // Predicated region
      $region45: #{moegpt_forward.12} parent=31 // pred_check
        %p524 = pneg %p137
      $region46: #{moegpt_forward.12} parent=31 // pred_check_branch
        %526 = sbr.rel (%p524) target = $region48
      $region47: #{moegpt_forward.12} parent=31 // pred_region
        _
      $region48: #{moegpt_forward.12} parent=31 // pred_fallthru
        _
    $region32: #{moegpt_forward.12} parent=5 // pred_fallthru
      _
    %p527 = scmp.le.s32.totalorder 2, %s9
    // Predicated region
    $region49: #{moegpt_forward.12} parent=5 // pred_check
      %p528 = pneg %p527
    $region50: #{moegpt_forward.12} parent=5 // pred_check_branch
      %530 = sbr.rel (%p528) target = $region52
    $region51: #{moegpt_forward.12} parent=5 // pred_region
      %s531 = ssub.s32 %s9, 2
      // Predicated region
      $region53: #{moegpt_forward.12} parent=51 // pred_check
        %p532 = pneg %p143
      $region54: #{moegpt_forward.12} parent=51 // pred_check_branch
        %534 = sbr.rel (%p532) target = $region56
      $region55: #{moegpt_forward.12} parent=51 // pred_region
        %p535 = scmp.lt.s32.totalorder %s22, 1
        %s536 = scalar_select %p535, %s22, 1
        %p537 = scmp.lt.s32.totalorder %s23, 0
        %s538 = scalar_select %p537, %s23, 0
        %s539 = smul.addr %s536, 2
        %s540 = sadd.s32 %s538, %s539
        %s541 = smul.addr %s540, 8
        %s542 = scalar_lea.vmem %s3, %s541
      $region56: #{moegpt_forward.12} parent=51 // pred_fallthru
        _
    $region52: #{moegpt_forward.12} parent=5 // pred_fallthru
      _
  $region6: #{moegpt_forward.12} parent=0 // loop_footer
    %s13 = sadd.s32 1, %s9
  $region7: #{moegpt_forward.12} parent=0 // loop_footer_branch
    %8 = sbr.rel target = $region3
  $region8: #{moegpt_forward.12} parent=0 // loop_exit
    _

// kernel: moegpt_forward.14
$region0: #{moegpt_forward.14}
  #allocation0 [shape = 'u32[]', space=smem, size = 0x4, offset = 0x4, fixed_abs, tag = 'smem constant byte address 0x4 - core index']
  #allocation1 [shape = 'u32[72,128]{1,0:T(1,128)}', space=vmem, size = 0x9000, scoped, tag = 'internal scratch']
  %s0 = inlined_call_operand.vmem [shape: f32[16,32], index: 0, kind: input, shape index: {}]
  %s1 = inlined_call_operand.vmem [shape: f32[1,32], index: 1, kind: input, shape index: {}]
  %s2 = inlined_call_operand.vmem [shape: f32[32,4], index: 2, kind: input, shape index: {}]
  %s3 = inlined_call_operand.vmem [shape: f32[1,4], index: 3, kind: input, shape index: {}]
  %s4 = inlined_call_operand.vmem [shape: f32[16,4], index: 4, kind: output, shape index: {}]
  %s5 = sld [smem:[#allocation0]]
  $region26: #{moegpt_forward.14} parent=0
    _
  %s7 = ssub.s32 1, %s5
  %s8 = scalar_select 0, %s7, %s5
  // Predicated region
  $region2: #{moegpt_forward.14} parent=0 // pred_check
    _
  $region3: #{moegpt_forward.14} parent=0 // pred_check_branch
    %10 = sbr.rel (0) target = $region5
  $region4: #{moegpt_forward.14} parent=0 // pred_region
    _
  $region5: #{moegpt_forward.14} parent=0 // pred_fallthru
    _
  // Predicated region
  $region6: #{moegpt_forward.14} parent=0 // pred_check
    _
  $region7: #{moegpt_forward.14} parent=0 // pred_check_branch
    %12 = sbr.rel (0) target = $region9
  $region8: #{moegpt_forward.14} parent=0 // pred_region
    _
  $region9: #{moegpt_forward.14} parent=0 // pred_fallthru
    _
  // Predicated region
  $region10: #{moegpt_forward.14} parent=0 // pred_check
    _
  $region11: #{moegpt_forward.14} parent=0 // pred_check_branch
    %14 = sbr.rel (0) target = $region13
  $region12: #{moegpt_forward.14} parent=0 // pred_region
    _
  $region13: #{moegpt_forward.14} parent=0 // pred_fallthru
    _
  // Predicated region
  $region14: #{moegpt_forward.14} parent=0 // pred_check
    _
  $region15: #{moegpt_forward.14} parent=0 // pred_check_branch
    %16 = sbr.rel (0) target = $region17
  $region16: #{moegpt_forward.14} parent=0 // pred_region
    _
  $region17: #{moegpt_forward.14} parent=0 // pred_fallthru
    _
  %v18 = vld [vmem:[%s0] sm:$0xff]
  %v19 = vld [vmem:[%s0 + $0x8] sm:$0xff]
  %v20 = vmul.f32 %v18, %v18
  %v21 = vmul.f32 %v19, %v19
  %vm22 = vcmask 261120
  %v23 = vsel %vm22, %v20, 0.0
  %24 = vadd.xlane.f32.xlu0 %v23
  %v25 = vpop.xlane.xlu0 %24
  %v26 = vsel %vm22, %v21, 0.0
  %27 = vadd.xlane.f32.xlu0 %v26
  %v28 = vpop.xlane.xlu0 %27
  %v29 = vrcp.pop 32.0
  %v30 = vmul.f32 32.0, %v29
  %v31 = vsub.f32 1.0, %v30
  %v32 = vmul.f32 %v29, %v31
  %v33 = vadd.f32 %v29, %v32
  %vm34 = vweird.f32 %v29
  %v35 = vsel %vm34, %v29, %v33
  %v36 = vmul.f32 %v25, %v35
  %v37 = vmul.f32 %v28, %v35
  %v38 = vadd.f32 %v36, 1e-05
  %v39 = vadd.f32 %v37, 1e-05
  %v40 = vrsqrt.pop %v38
  %v41 = vmul.f32 %v40, %v38
  %v42 = vmul.f32 %v41, %v40
  %v43 = vmul.f32 0.5, %v42
  %v44 = vsub.f32 1.5, %v43
  %v45 = vmul.f32 %v40, %v44
  %vm46 = vweird.f32 %v38
  %vm47 = vweird.f32 %v40
  %vm48 = vmor %vm46, %vm47
  %v49 = vsel %vm48, %v40, %v45
  %v50 = vrsqrt.pop %v39
  %v51 = vmul.f32 %v50, %v39
  %v52 = vmul.f32 %v51, %v50
  %v53 = vmul.f32 0.5, %v52
  %v54 = vsub.f32 1.5, %v53
  %v55 = vmul.f32 %v50, %v54
  %vm56 = vweird.f32 %v39
  %vm57 = vweird.f32 %v50
  %vm58 = vmor %vm56, %vm57
  %v59 = vsel %vm58, %v50, %v55
  %v60 = vmul.f32 %v18, %v49
  %v61 = vmul.f32 %v19, %v59
  %v62 = vld [vmem:[%s1] sm:$0x1]
  %v64 = vperm.slane %v62, 0
  %v66 = vmul.f32 %v60, %v64
  %v67 = vmul.f32 %v61, %v64
  %v68 = vpack.c.bf16 %v67, %v66
  %v69 = vld [vmem:[%s2] sm:$0xff]
  %v70 = vld [vmem:[%s2 + $0x8] sm:$0xff]
  %v71 = vld [vmem:[%s2 + $0x10] sm:$0xff]
  %v72 = vld [vmem:[%s2 + $0x18] sm:$0xff]
  %v73 = vpack.c.bf16 %v70, %v69
  %v74 = vpack.c.bf16 %v72, %v71
  %v75 = vld [vmem:[%s3] sm:$0x1]
  %v77 = vperm.slane %v75, 0
  %v80 = vsel %vm22, %v68, 0
  %82 = vmatpush.bf16.msra.mxu0 0
  %83 = vmatpush.bf16.msra.mxu0 0
  %84 = vmatpush.bf16.msra.mxu0 0
  %85 = vmatpush.bf16.msra.mxu0 0
  %86 = vmatpush.bf16.msra.mxu0 0
  %87 = vmatpush.bf16.msra.mxu0 0
  %88 = vmatpush.bf16.msra.mxu0 %v74
  %89 = vmatpush.bf16.msra.mxu0 %v73
  %90 = vmatmul.bf16.gmra.mxu0 %v80
  %v91 = vpop.f32.mrf.mxu0
  %v92 = vadd.f32 %v77, %v91
  %v93 = vpop.f32.mrf.mxu0
  %v94 = vadd.f32 %v77, %v93
  %95 = vdwg.mxu0
  %vm96 = vcmask 31744
  %97 = vst.msk [vmem:[%s4] sm:$0xff] %vm96, %v92
  %98 = vst.msk [vmem:[%s4 + $0x8] sm:$0xff] %vm96, %v94
  // Predicated region
  $region18: #{moegpt_forward.14} parent=0 // pred_check
    _
  $region19: #{moegpt_forward.14} parent=0 // pred_check_branch
    %100 = sbr.rel (0) target = $region21
  $region20: #{moegpt_forward.14} parent=0 // pred_region
    _
  $region21: #{moegpt_forward.14} parent=0 // pred_fallthru
    _
  // Predicated region
  $region22: #{moegpt_forward.14} parent=0 // pred_check
    _
  $region23: #{moegpt_forward.14} parent=0 // pred_check_branch
    %102 = sbr.rel (0) target = $region25
  $region24: #{moegpt_forward.14} parent=0 // pred_region
    _
  $region25: #{moegpt_forward.14} parent=0 // pred_fallthru
    _

// kernel: moegpt_forward.21
$region0: #{moegpt_forward.21}
  #allocation0 [shape = 'u32[]', space=smem, size = 0x4, offset = 0x4, fixed_abs, tag = 'smem constant byte address 0x4 - core index']
  #allocation1 [shape = 'u32[72,128]{1,0:T(1,128)}', space=vmem, size = 0x9000, scoped, tag = 'internal scratch']
  %s0 = inlined_call_operand.vmem [shape: f32[16,32], index: 0, kind: input, shape index: {}]
  %s1 = inlined_call_operand.vmem [shape: f32[1,32], index: 1, kind: input, shape index: {}]
  %s2 = inlined_call_operand.vmem [shape: f32[128,32], index: 2, kind: input, shape index: {}]
  %s3 = inlined_call_operand.hbm [shape: f32[16,128], index: 3, kind: output, shape index: {}]
  %s4 = sld [smem:[#allocation0]]
  $region22: #{moegpt_forward.21} parent=0
    _
  %s6 = ssub.s32 1, %s4
  %s7 = scalar_select 0, %s6, %s4
  $region1: #{moegpt_forward.21} parent=0
    #allocation2 [shape = 'u8[8192]{0}', space=vmem, size = 0x2000, scoped, tag = 'output window, operand 0, single buffered']
    #allocation3 [shape = 's32[1]{0}', space=sflag, size = 0x4, scoped, tag = 'scoped memory for moegpt_forward.21']
    %8 = vsyncpa [#allocation3], 0
    // Predicated region
    $region2: #{moegpt_forward.21} parent=1 // pred_check
      _
    $region3: #{moegpt_forward.21} parent=1 // pred_check_branch
      %10 = sbr.rel (0) target = $region5
    $region4: #{moegpt_forward.21} parent=1 // pred_region
      _
    $region5: #{moegpt_forward.21} parent=1 // pred_fallthru
      _
    // Predicated region
    $region6: #{moegpt_forward.21} parent=1 // pred_check
      _
    $region7: #{moegpt_forward.21} parent=1 // pred_check_branch
      %12 = sbr.rel (0) target = $region9
    $region8: #{moegpt_forward.21} parent=1 // pred_region
      _
    $region9: #{moegpt_forward.21} parent=1 // pred_fallthru
      _
    // Predicated region
    $region10: #{moegpt_forward.21} parent=1 // pred_check
      _
    $region11: #{moegpt_forward.21} parent=1 // pred_check_branch
      %14 = sbr.rel (0) target = $region13
    $region12: #{moegpt_forward.21} parent=1 // pred_region
      _
    $region13: #{moegpt_forward.21} parent=1 // pred_fallthru
      _
    %v15 = vld [vmem:[%s0] sm:$0xff]
    %v16 = vld [vmem:[%s0 + $0x8] sm:$0xff]
    %v17 = vmul.f32 %v15, %v15
    %v18 = vmul.f32 %v16, %v16
    %vm19 = vcmask 261120
    %v20 = vsel %vm19, %v17, 0.0
    %21 = vadd.xlane.f32.xlu0 %v20
    %v22 = vpop.xlane.xlu0 %21
    %v23 = vsel %vm19, %v18, 0.0
    %24 = vadd.xlane.f32.xlu0 %v23
    %v25 = vpop.xlane.xlu0 %24
    %v26 = vrcp.pop 32.0
    %v27 = vmul.f32 32.0, %v26
    %v28 = vsub.f32 1.0, %v27
    %v29 = vmul.f32 %v26, %v28
    %v30 = vadd.f32 %v26, %v29
    %vm31 = vweird.f32 %v26
    %v32 = vsel %vm31, %v26, %v30
    %v33 = vmul.f32 %v22, %v32
    %v34 = vmul.f32 %v25, %v32
    %v35 = vadd.f32 %v33, 1e-05
    %v36 = vadd.f32 %v34, 1e-05
    %v37 = vrsqrt.pop %v35
    %v38 = vmul.f32 %v37, %v35
    %v39 = vmul.f32 %v38, %v37
    %v40 = vmul.f32 0.5, %v39
    %v41 = vsub.f32 1.5, %v40
    %v42 = vmul.f32 %v37, %v41
    %vm43 = vweird.f32 %v35
    %vm44 = vweird.f32 %v37
    %vm45 = vmor %vm43, %vm44
    %v46 = vsel %vm45, %v37, %v42
    %v47 = vrsqrt.pop %v36
    %v48 = vmul.f32 %v47, %v36
    %v49 = vmul.f32 %v48, %v47
    %v50 = vmul.f32 0.5, %v49
    %v51 = vsub.f32 1.5, %v50
    %v52 = vmul.f32 %v47, %v51
    %vm53 = vweird.f32 %v36
    %vm54 = vweird.f32 %v47
    %vm55 = vmor %vm53, %vm54
    %v56 = vsel %vm55, %v47, %v52
    %v57 = vmul.f32 %v15, %v46
    %v58 = vmul.f32 %v16, %v56
    %v59 = vld [vmem:[%s1] sm:$0x1]
    %v61 = vperm.slane %v59, 0
    %v63 = vmul.f32 %v57, %v61
    %v64 = vmul.f32 %v58, %v61
    %v65 = vld [vmem:[%s2] sm:$0xff]
    %v66 = vld [vmem:[%s2 + $0x8] sm:$0xff]
    %v67 = vld [vmem:[%s2 + $0x10] sm:$0xff]
    %v68 = vld [vmem:[%s2 + $0x18] sm:$0xff]
    %v69 = vld [vmem:[%s2 + $0x20] sm:$0xff]
    %v70 = vld [vmem:[%s2 + $0x28] sm:$0xff]
    %v71 = vld [vmem:[%s2 + $0x30] sm:$0xff]
    %v72 = vld [vmem:[%s2 + $0x38] sm:$0xff]
    %v73 = vld [vmem:[%s2 + $0x40] sm:$0xff]
    %v74 = vld [vmem:[%s2 + $0x48] sm:$0xff]
    %v75 = vld [vmem:[%s2 + $0x50] sm:$0xff]
    %v76 = vld [vmem:[%s2 + $0x58] sm:$0xff]
    %v77 = vld [vmem:[%s2 + $0x60] sm:$0xff]
    %v78 = vld [vmem:[%s2 + $0x68] sm:$0xff]
    %v79 = vld [vmem:[%s2 + $0x70] sm:$0xff]
    %v80 = vld [vmem:[%s2 + $0x78] sm:$0xff]
    %v81 = vpack.c.bf16 %v66, %v65
    %v82 = vpack.c.bf16 %v68, %v67
    %v83 = vpack.c.bf16 %v70, %v69
    %v84 = vpack.c.bf16 %v72, %v71
    %v85 = vpack.c.bf16 %v74, %v73
    %v86 = vpack.c.bf16 %v76, %v75
    %v87 = vpack.c.bf16 %v78, %v77
    %v88 = vpack.c.bf16 %v80, %v79
    %v89 = vpack.c.bf16 %v64, %v63
    %v91 = vsel %vm19, %v89, 0
    %v94 = vsel %vm19, %v81, 0
    %v97 = vsel %vm19, %v82, 0
    %v100 = vsel %vm19, %v83, 0
    %v103 = vsel %vm19, %v84, 0
    %v106 = vsel %vm19, %v85, 0
    %v109 = vsel %vm19, %v86, 0
    %v112 = vsel %vm19, %v87, 0
    %v115 = vsel %vm19, %v88, 0
    %117 = vmatpush.bf16.xpose.msra.mxu0 %v115
    %118 = vmatpush.bf16.xpose.msra.mxu0 %v112
    %119 = vmatpush.bf16.xpose.msra.mxu0 %v109
    %120 = vmatpush.bf16.xpose.msra.mxu0 %v106
    %121 = vmatpush.bf16.xpose.msra.mxu0 %v103
    %122 = vmatpush.bf16.xpose.msra.mxu0 %v100
    %123 = vmatpush.bf16.xpose.msra.mxu0 %v97
    %124 = vmatpush.bf16.xpose.msra.mxu0 %v94
    %125 = vmatmul.bf16.gmra.mxu0 %v91
    %v126 = vpop.f32.mrf.mxu0
    %v127 = vadd.f32 0.0, %v126
    %v128 = vpop.f32.mrf.mxu0
    %v129 = vadd.f32 0.0, %v128
    %130 = vdwg.mxu0
    %131 = vst [vmem:[#allocation2] sm:$0xff] %v127
    %132 = vst [vmem:[#allocation2 + $0x8] sm:$0xff] %v129
    // Predicated region
    $region14: #{moegpt_forward.21} parent=1 // pred_check
      _
    $region15: #{moegpt_forward.21} parent=1 // pred_check_branch
      %134 = sbr.rel (0) target = $region17
    $region16: #{moegpt_forward.21} parent=1 // pred_region
      %136 = vsyncadd [#allocation3], 0
      %s137 = sshll.u32 [#allocation2], 4
      %s138 = int_to_ptr.vmem [resolvable:$true] %s137
      %s139 = sshll.u32 %s3, 4
      %s140 = int_to_ptr.hbm [resolvable:$true] %s139
      %145 = dma.vmem_to_hbm [thread:$0]  %s138, 256, %s140, [#allocation3], 128, 128, 8
    $region17: #{moegpt_forward.21} parent=1 // pred_fallthru
      _
    // Predicated region
    $region18: #{moegpt_forward.21} parent=1 // pred_check
      _
    $region19: #{moegpt_forward.21} parent=1 // pred_check_branch
      %147 = sbr.rel (0) target = $region21
    $region20: #{moegpt_forward.21} parent=1 // pred_region
      %149 = dma.done [#allocation3], 256
    $region21: #{moegpt_forward.21} parent=1 // pred_fallthru
      _
    %150 = vsyncpa [#allocation3], 1

// kernel: moegpt_forward.15
$region0: #{moegpt_forward.15}
  #allocation0 [shape = 'u32[]', space=smem, size = 0x4, offset = 0x4, fixed_abs, tag = 'smem constant byte address 0x4 - core index']
  #allocation1 [shape = 'u32[72,128]{1,0:T(1,128)}', space=vmem, size = 0x9000, scoped, tag = 'internal scratch']
  #allocation2 [shape = 'f32[16,32]{1,0:T(8,128)}', space=vmem, size = 0x2000, scoped, tag = 'scratch operand']
  %s0 = inlined_call_operand.vmem [shape: f32[16,32], index: 0, kind: input, shape index: {}]
  %s1 = inlined_call_operand.vmem [shape: f32[1,32], index: 1, kind: input, shape index: {}]
  %s2 = inlined_call_operand.vmem [shape: f32[4,16,1], index: 2, kind: input, shape index: {}]
  %s3 = inlined_call_operand.vmem [shape: f32[4,64,32], index: 3, kind: input, shape index: {}]
  %s4 = inlined_call_operand.vmem [shape: f32[4,1,64], index: 4, kind: input, shape index: {}]
  %s5 = inlined_call_operand.vmem [shape: f32[4,64,32], index: 5, kind: input, shape index: {}]
  %s6 = inlined_call_operand.vmem [shape: f32[4,1,64], index: 6, kind: input, shape index: {}]
  %s7 = inlined_call_operand.vmem [shape: f32[4,64,32], index: 7, kind: input, shape index: {}]
  %s8 = inlined_call_operand.vmem [shape: f32[4,1,32], index: 8, kind: input, shape index: {}]
  %s9 = inlined_call_operand.vmem [shape: f32[16,32], index: 9, kind: output, shape index: {}]
  %s10 = sld [smem:[#allocation0]]
  $region77: #{moegpt_forward.15} parent=0
    _
  %s12 = ssub.s32 1, %s10
  %s13 = scalar_select 0, %s12, %s10
  loop: start=0, step=1, limit=6
  $region2: #{moegpt_forward.15} parent=0 // loop_pre_header
    _
  $region3: #{moegpt_forward.15} parent=0 // loop_header
    %s15 = sphi 0, %s19
    %p16 = scmp.ge.s32.totalorder %s15, 6
    %s22 = sphi 0, %s41
    %s23 = sphi 0, %s37
    %s24 = sphi 0, %s33
    %s25 = sphi 0, %s22
    %s26 = sphi 0, %s23
    %s27 = sphi 0, %s24
    %s28 = sphi 0, %s25
    %s29 = sphi 0, %s26
    %s30 = sphi 0, %s27
    %s44 = sphi 0, %s46
    %s47 = sphi 0, %s44
    %s48 = sphi 0, %s47
    %s64 = sphi 0, %s48
    %s68 = sphi 0, %s68
    %s70 = sphi 0, %s68
    %s71 = sphi 0, %s70
    %s85 = sphi 0, %s71
    %s93 = sphi 0, %s95
    %s96 = sphi 0, %s93
    %s97 = sphi 0, %s96
    %s113 = sphi 0, %s97
    %s121 = sphi 0, %s123
    %s124 = sphi 0, %s121
    %s125 = sphi 0, %s124
    %s141 = sphi 0, %s125
    %s149 = sphi 0, %s151
    %s152 = sphi 0, %s149
    %s153 = sphi 0, %s152
    %s169 = sphi 0, %s153
    %s177 = sphi 0, %s179
    %s180 = sphi 0, %s177
    %s181 = sphi 0, %s180
    %s197 = sphi 0, %s181
    %s205 = sphi 0, %s207
    %s208 = sphi 0, %s205
    %s209 = sphi 0, %s208
    %s225 = sphi 0, %s209
    %s233 = sphi 0, %s235
    %s236 = sphi 0, %s233
    %s237 = sphi 0, %s236
    %s253 = sphi 0, %s237
    %s259 = sphi 0, %s261
    %s262 = sphi 0, %s259
    %s263 = sphi 0, %s262
    %s279 = sphi 0, %s263
    %s285 = sphi 0, %s287
    %s288 = sphi 0, %s285
    %s289 = sphi 0, %s288
    %s305 = sphi 0, %s289
  $region4: #{moegpt_forward.15} parent=0 // loop_header_branch
    %18 = sbr.rel (%p16) target = $region8
  $region5: #{moegpt_forward.15} parent=0 // loop_body
    %s20 = ssub.s32 %s15, 1
    %s21 = ssub.s32 %s15, 2
    %s31 = sadd.s32 1, %s24
    %p32 = scmp.ge.s32.totalorder %s31, 1
    %s33 = scalar_select %p32, 0, %s31
    %s34 = sadd.s32 1, %s23
    %s35 = scalar_select %p32, %s34, %s23
    %p36 = scmp.ge.s32.totalorder %s35, 4
    %s37 = scalar_select %p36, 0, %s35
    %s38 = sadd.s32 1, %s22
    %s39 = scalar_select %p36, %s38, %s22
    %p40 = scmp.ge.s32.totalorder %s39, 1
    %s41 = scalar_select %p40, 0, %s39
    %s42 = ssub.s32 %s22, %s41
    %p43 = scmp.eq.s32.totalorder %s42, 0
    %s45 = sadd.s32 %s44, 1
    %s46 = scalar_select %p43, %s44, %s45
    %p49 = pneg %p43
    %p50 = scmp.eq.s32.totalorder %s15, 3
    %p51 = por %p49, %p50
    %p52 = scmp.ne.s32.totalorder %s44, %s47
    %p53 = scmp.eq.s32.totalorder %s15, 0
    %p54 = por %p52, %p53
    %p55 = scmp.ne.s32.totalorder %s44, %s47
    %p56 = scmp.eq.s32.totalorder %s20, 3
    %p57 = por %p55, %p56
    %p58 = scmp.ne.s32.totalorder %s47, %s48
    %p59 = scmp.eq.s32.totalorder %s20, 0
    %p60 = por %p58, %p59
    %p61 = scmp.ne.s32.totalorder %s47, %s48
    %p62 = scmp.eq.s32.totalorder %s21, 3
    %p63 = por %p61, %p62
    %p65 = scmp.ne.s32.totalorder %s48, %s64
    %p66 = scmp.eq.s32.totalorder %s21, 0
    %p67 = por %p65, %p66
    %s69 = sadd.s32 %s68, 1
    %p72 = scmp.eq.s32.totalorder %s15, 3
    %p73 = scmp.ne.s32.totalorder %s68, %s70
    %p74 = scmp.eq.s32.totalorder %s15, 0
    %p75 = por %p73, %p74
    %p76 = scmp.ne.s32.totalorder %s68, %s70
    %p77 = scmp.eq.s32.totalorder %s20, 3
    %p78 = por %p76, %p77
    %p79 = scmp.ne.s32.totalorder %s70, %s71
    %p80 = scmp.eq.s32.totalorder %s20, 0
    %p81 = por %p79, %p80
    %p82 = scmp.ne.s32.totalorder %s70, %s71
    %p83 = scmp.eq.s32.totalorder %s21, 3
    %p84 = por %p82, %p83
    %p86 = scmp.ne.s32.totalorder %s71, %s85
    %p87 = scmp.eq.s32.totalorder %s21, 0
    %p88 = por %p86, %p87
    %s89 = ssub.s32 %s23, %s37
    %s90 = ssub.s32 %s22, %s41
    %s91 = sor.u32 %s89, %s90
    %p92 = scmp.eq.s32.totalorder %s91, 0
    %s94 = sadd.s32 %s93, 1
    %s95 = scalar_select %p92, %s93, %s94
    %p98 = pneg %p92
    %p99 = scmp.eq.s32.totalorder %s15, 3
    %p100 = por %p98, %p99
    %p101 = scmp.ne.s32.totalorder %s93, %s96
    %p102 = scmp.eq.s32.totalorder %s15, 0
    %p103 = por %p101, %p102
    %p104 = scmp.ne.s32.totalorder %s93, %s96
    %p105 = scmp.eq.s32.totalorder %s20, 3
    %p106 = por %p104, %p105
    %p107 = scmp.ne.s32.totalorder %s96, %s97
    %p108 = scmp.eq.s32.totalorder %s20, 0
    %p109 = por %p107, %p108
    %p110 = scmp.ne.s32.totalorder %s96, %s97
    %p111 = scmp.eq.s32.totalorder %s21, 3
    %p112 = por %p110, %p111
    %p114 = scmp.ne.s32.totalorder %s97, %s113
    %p115 = scmp.eq.s32.totalorder %s21, 0
    %p116 = por %p114, %p115
    %s117 = ssub.s32 %s23, %s37
    %s118 = ssub.s32 %s24, %s33
    %s119 = sor.u32 %s117, %s118
    %p120 = scmp.eq.s32.totalorder %s119, 0
    %s122 = sadd.s32 %s121, 1
    %s123 = scalar_select %p120, %s121, %s122
    %p126 = pneg %p120
    %p127 = scmp.eq.s32.totalorder %s15, 3
    %p128 = por %p126, %p127
    %p129 = scmp.ne.s32.totalorder %s121, %s124
    %p130 = scmp.eq.s32.totalorder %s15, 0
    %p131 = por %p129, %p130
    %p132 = scmp.ne.s32.totalorder %s121, %s124
    %p133 = scmp.eq.s32.totalorder %s20, 3
    %p134 = por %p132, %p133
    %p135 = scmp.ne.s32.totalorder %s124, %s125
    %p136 = scmp.eq.s32.totalorder %s20, 0
    %p137 = por %p135, %p136
    %p138 = scmp.ne.s32.totalorder %s124, %s125
    %p139 = scmp.eq.s32.totalorder %s21, 3
    %p140 = por %p138, %p139
    %p142 = scmp.ne.s32.totalorder %s125, %s141
    %p143 = scmp.eq.s32.totalorder %s21, 0
    %p144 = por %p142, %p143
    %s145 = ssub.s32 %s23, %s37
    %s146 = ssub.s32 %s24, %s33
    %s147 = sor.u32 %s145, %s146
    %p148 = scmp.eq.s32.totalorder %s147, 0
    %s150 = sadd.s32 %s149, 1
    %s151 = scalar_select %p148, %s149, %s150
    %p154 = pneg %p148
    %p155 = scmp.eq.s32.totalorder %s15, 3
    %p156 = por %p154, %p155
    %p157 = scmp.ne.s32.totalorder %s149, %s152
    %p158 = scmp.eq.s32.totalorder %s15, 0
    %p159 = por %p157, %p158
    %p160 = scmp.ne.s32.totalorder %s149, %s152
    %p161 = scmp.eq.s32.totalorder %s20, 3
    %p162 = por %p160, %p161
    %p163 = scmp.ne.s32.totalorder %s152, %s153
    %p164 = scmp.eq.s32.totalorder %s20, 0
    %p165 = por %p163, %p164
    %p166 = scmp.ne.s32.totalorder %s152, %s153
    %p167 = scmp.eq.s32.totalorder %s21, 3
    %p168 = por %p166, %p167
    %p170 = scmp.ne.s32.totalorder %s153, %s169
    %p171 = scmp.eq.s32.totalorder %s21, 0
    %p172 = por %p170, %p171
    %s173 = ssub.s32 %s23, %s37
    %s174 = ssub.s32 %s24, %s33
    %s175 = sor.u32 %s173, %s174
    %p176 = scmp.eq.s32.totalorder %s175, 0
    %s178 = sadd.s32 %s177, 1
    %s179 = scalar_select %p176, %s177, %s178
    %p182 = pneg %p176
    %p183 = scmp.eq.s32.totalorder %s15, 3
    %p184 = por %p182, %p183
    %p185 = scmp.ne.s32.totalorder %s177, %s180
    %p186 = scmp.eq.s32.totalorder %s15, 0
    %p187 = por %p185, %p186
    %p188 = scmp.ne.s32.totalorder %s177, %s180
    %p189 = scmp.eq.s32.totalorder %s20, 3
    %p190 = por %p188, %p189
    %p191 = scmp.ne.s32.totalorder %s180, %s181
    %p192 = scmp.eq.s32.totalorder %s20, 0
    %p193 = por %p191, %p192
    %p194 = scmp.ne.s32.totalorder %s180, %s181
    %p195 = scmp.eq.s32.totalorder %s21, 3
    %p196 = por %p194, %p195
    %p198 = scmp.ne.s32.totalorder %s181, %s197
    %p199 = scmp.eq.s32.totalorder %s21, 0
    %p200 = por %p198, %p199
    %s201 = ssub.s32 %s23, %s37
    %s202 = ssub.s32 %s24, %s33
    %s203 = sor.u32 %s201, %s202
    %p204 = scmp.eq.s32.totalorder %s203, 0
    %s206 = sadd.s32 %s205, 1
    %s207 = scalar_select %p204, %s205, %s206
    %p210 = pneg %p204
    %p211 = scmp.eq.s32.totalorder %s15, 3
    %p212 = por %p210, %p211
    %p213 = scmp.ne.s32.totalorder %s205, %s208
    %p214 = scmp.eq.s32.totalorder %s15, 0
    %p215 = por %p213, %p214
    %p216 = scmp.ne.s32.totalorder %s205, %s208
    %p217 = scmp.eq.s32.totalorder %s20, 3
    %p218 = por %p216, %p217
    %p219 = scmp.ne.s32.totalorder %s208, %s209
    %p220 = scmp.eq.s32.totalorder %s20, 0
    %p221 = por %p219, %p220
    %p222 = scmp.ne.s32.totalorder %s208, %s209
    %p223 = scmp.eq.s32.totalorder %s21, 3
    %p224 = por %p222, %p223
    %p226 = scmp.ne.s32.totalorder %s209, %s225
    %p227 = scmp.eq.s32.totalorder %s21, 0
    %p228 = por %p226, %p227
    %s229 = ssub.s32 %s23, %s37
    %s230 = ssub.s32 %s24, %s33
    %s231 = sor.u32 %s229, %s230
    %p232 = scmp.eq.s32.totalorder %s231, 0
    %s234 = sadd.s32 %s233, 1
    %s235 = scalar_select %p232, %s233, %s234
    %p238 = pneg %p232
    %p239 = scmp.eq.s32.totalorder %s15, 3
    %p240 = por %p238, %p239
    %p241 = scmp.ne.s32.totalorder %s233, %s236
    %p242 = scmp.eq.s32.totalorder %s15, 0
    %p243 = por %p241, %p242
    %p244 = scmp.ne.s32.totalorder %s233, %s236
    %p245 = scmp.eq.s32.totalorder %s20, 3
    %p246 = por %p244, %p245
    %p247 = scmp.ne.s32.totalorder %s236, %s237
    %p248 = scmp.eq.s32.totalorder %s20, 0
    %p249 = por %p247, %p248
    %p250 = scmp.ne.s32.totalorder %s236, %s237
    %p251 = scmp.eq.s32.totalorder %s21, 3
    %p252 = por %p250, %p251
    %p254 = scmp.ne.s32.totalorder %s237, %s253
    %p255 = scmp.eq.s32.totalorder %s21, 0
    %p256 = por %p254, %p255
    %s257 = ssub.s32 %s23, %s37
    %p258 = scmp.eq.s32.totalorder %s257, 0
    %s260 = sadd.s32 %s259, 1
    %s261 = scalar_select %p258, %s259, %s260
    %p264 = pneg %p258
    %p265 = scmp.eq.s32.totalorder %s15, 3
    %p266 = por %p264, %p265
    %p267 = scmp.ne.s32.totalorder %s259, %s262
    %p268 = scmp.eq.s32.totalorder %s15, 0
    %p269 = por %p267, %p268
    %p270 = scmp.ne.s32.totalorder %s259, %s262
    %p271 = scmp.eq.s32.totalorder %s20, 3
    %p272 = por %p270, %p271
    %p273 = scmp.ne.s32.totalorder %s262, %s263
    %p274 = scmp.eq.s32.totalorder %s20, 0
    %p275 = por %p273, %p274
    %p276 = scmp.ne.s32.totalorder %s262, %s263
    %p277 = scmp.eq.s32.totalorder %s21, 3
    %p278 = por %p276, %p277
    %p280 = scmp.ne.s32.totalorder %s263, %s279
    %p281 = scmp.eq.s32.totalorder %s21, 0
    %p282 = por %p280, %p281
    %s283 = ssub.s32 %s22, %s41
    %p284 = scmp.eq.s32.totalorder %s283, 0
    %s286 = sadd.s32 %s285, 1
    %s287 = scalar_select %p284, %s285, %s286
    %p290 = pneg %p284
    %p291 = scmp.eq.s32.totalorder %s15, 3
    %p292 = por %p290, %p291
    %p293 = scmp.ne.s32.totalorder %s285, %s288
    %p294 = scmp.eq.s32.totalorder %s15, 0
    %p295 = por %p293, %p294
    %p296 = scmp.ne.s32.totalorder %s285, %s288
    %p297 = scmp.eq.s32.totalorder %s20, 3
    %p298 = por %p296, %p297
    %p299 = scmp.ne.s32.totalorder %s288, %s289
    %p300 = scmp.eq.s32.totalorder %s20, 0
    %p301 = por %p299, %p300
    %p302 = scmp.ne.s32.totalorder %s288, %s289
    %p303 = scmp.eq.s32.totalorder %s21, 3
    %p304 = por %p302, %p303
    %p306 = scmp.ne.s32.totalorder %s289, %s305
    %p307 = scmp.eq.s32.totalorder %s21, 0
    %p308 = por %p306, %p307
    %p309 = scmp.le.s32.totalorder 1, %s15
    %p310 = scmp.lt.s32.totalorder %s15, 5
    %p311 = pnand %p309, %p310
    %p312 = pneg %p311
    // Predicated region
    $region9: #{moegpt_forward.15} parent=5 // pred_check
      _
    $region10: #{moegpt_forward.15} parent=5 // pred_check_branch
      %314 = sbr.rel (%p311) target = $region12
    $region11: #{moegpt_forward.15} parent=5 // pred_region
      %s315 = ssub.s32 %s15, 1
      // Predicated region
      $region13: #{moegpt_forward.15} parent=11 // pred_check
        %p316 = pneg %p60
      $region14: #{moegpt_forward.15} parent=11 // pred_check_branch
        %318 = sbr.rel (%p316) target = $region16
      $region15: #{moegpt_forward.15} parent=11 // pred_region
        %s319 = smul.u32 2, %s25
        %p320 = scmp.lt.s32.totalorder %s319, 1
        %s321 = scalar_select %p320, %s319, 1
        %s322 = smul.addr %s321, 8
        %s323 = scalar_lea.vmem %s0, %s322
        %s324 = smul.u32 2, %s25
      $region16: #{moegpt_forward.15} parent=11 // pred_fallthru
        _
      // Predicated region
      $region17: #{moegpt_forward.15} parent=11 // pred_check
        %p325 = pneg %p81
      $region18: #{moegpt_forward.15} parent=11 // pred_check_branch
        %327 = sbr.rel (%p325) target = $region20
      $region19: #{moegpt_forward.15} parent=11 // pred_region
        _
      $region20: #{moegpt_forward.15} parent=11 // pred_fallthru
        _
    $region12: #{moegpt_forward.15} parent=5 // pred_fallthru
      _
    %p328 = scmp.lt.s32.totalorder %s15, 4
    // Predicated region
    $region21: #{moegpt_forward.15} parent=5 // pred_check
      %p329 = pneg %p328
    $region22: #{moegpt_forward.15} parent=5 // pred_check_branch
      %331 = sbr.rel (%p329) target = $region24
    $region23: #{moegpt_forward.15} parent=5 // pred_region
      // Predicated region
      $region25: #{moegpt_forward.15} parent=23 // pred_check
        %p332 = pneg %p103
      $region26: #{moegpt_forward.15} parent=23 // pred_check_branch
        %334 = sbr.rel (%p332) target = $region28
      $region27: #{moegpt_forward.15} parent=23 // pred_region
        %s335 = smul.u32 2, %s22
        %p336 = scmp.lt.s32.totalorder %s23, 3
        %s337 = scalar_select %p336, %s23, 3
        %p338 = scmp.lt.s32.totalorder %s335, 1
        %s339 = scalar_select %p338, %s335, 1
        %s340 = smul.addr %s337, 2
        %s341 = sadd.s32 %s339, %s340
        %s342 = smul.addr %s341, 8
        %s343 = scalar_lea.vmem %s2, %s342
        %s344 = smul.u32 2, %s22
      $region28: #{moegpt_forward.15} parent=23 // pred_fallthru
        _
      // Predicated region
      $region29: #{moegpt_forward.15} parent=23 // pred_check
        %p345 = pneg %p131
      $region30: #{moegpt_forward.15} parent=23 // pred_check_branch
        %347 = sbr.rel (%p345) target = $region32
      $region31: #{moegpt_forward.15} parent=23 // pred_region
        %s348 = smul.u32 8, %s24
        %p349 = scmp.lt.s32.totalorder %s23, 3
        %s350 = scalar_select %p349, %s23, 3
        %p351 = scmp.lt.s32.totalorder %s348, 7
        %s352 = scalar_select %p351, %s348, 7
        %s353 = smul.addr %s350, 8
        %s354 = sadd.s32 %s352, %s353
        %s355 = smul.addr %s354, 8
        %s356 = scalar_lea.vmem %s3, %s355
        %s357 = smul.u32 8, %s24
      $region32: #{moegpt_forward.15} parent=23 // pred_fallthru
        _
      // Predicated region
      $region33: #{moegpt_forward.15} parent=23 // pred_check
        %p358 = pneg %p159
      $region34: #{moegpt_forward.15} parent=23 // pred_check_branch
        %360 = sbr.rel (%p358) target = $region36
      $region35: #{moegpt_forward.15} parent=23 // pred_region
        %p361 = scmp.lt.s32.totalorder %s23, 3
        %s362 = scalar_select %p361, %s23, 3
        %p363 = scmp.lt.s32.totalorder %s24, 0
        %s364 = scalar_select %p363, %s24, 0
        %s365 = sadd.s32 %s364, %s362
        %s366 = scalar_lea.vmem %s4, %s365
      $region36: #{moegpt_forward.15} parent=23 // pred_fallthru
        _
      // Predicated region
      $region37: #{moegpt_forward.15} parent=23 // pred_check
        %p367 = pneg %p187
      $region38: #{moegpt_forward.15} parent=23 // pred_check_branch
        %369 = sbr.rel (%p367) target = $region40
      $region39: #{moegpt_forward.15} parent=23 // pred_region
        %s370 = smul.u32 8, %s24
        %p371 = scmp.lt.s32.totalorder %s23, 3
        %s372 = scalar_select %p371, %s23, 3
        %p373 = scmp.lt.s32.totalorder %s370, 7
        %s374 = scalar_select %p373, %s370, 7
        %s375 = smul.addr %s372, 8
        %s376 = sadd.s32 %s374, %s375
        %s377 = smul.addr %s376, 8
        %s378 = scalar_lea.vmem %s5, %s377
        %s379 = smul.u32 8, %s24
      $region40: #{moegpt_forward.15} parent=23 // pred_fallthru
        _
      // Predicated region
      $region41: #{moegpt_forward.15} parent=23 // pred_check
        %p380 = pneg %p215
      $region42: #{moegpt_forward.15} parent=23 // pred_check_branch
        %382 = sbr.rel (%p380) target = $region44
      $region43: #{moegpt_forward.15} parent=23 // pred_region
        %p383 = scmp.lt.s32.totalorder %s23, 3
        %s384 = scalar_select %p383, %s23, 3
        %p385 = scmp.lt.s32.totalorder %s24, 0
        %s386 = scalar_select %p385, %s24, 0
        %s387 = sadd.s32 %s386, %s384
        %s388 = scalar_lea.vmem %s6, %s387
      $region44: #{moegpt_forward.15} parent=23 // pred_fallthru
        _
      // Predicated region
      $region45: #{moegpt_forward.15} parent=23 // pred_check
        %p389 = pneg %p243
      $region46: #{moegpt_forward.15} parent=23 // pred_check_branch
        %391 = sbr.rel (%p389) target = $region48
      $region47: #{moegpt_forward.15} parent=23 // pred_region
        %s392 = smul.u32 8, %s24
        %p393 = scmp.lt.s32.totalorder %s23, 3
        %s394 = scalar_select %p393, %s23, 3
        %p395 = scmp.lt.s32.totalorder %s392, 7
        %s396 = scalar_select %p395, %s392, 7
        %s397 = smul.addr %s394, 8
        %s398 = sadd.s32 %s396, %s397
        %s399 = smul.addr %s398, 8
        %s400 = scalar_lea.vmem %s7, %s399
        %s401 = smul.u32 8, %s24
      $region48: #{moegpt_forward.15} parent=23 // pred_fallthru
        _
      // Predicated region
      $region49: #{moegpt_forward.15} parent=23 // pred_check
        %p402 = pneg %p269
      $region50: #{moegpt_forward.15} parent=23 // pred_check_branch
        %404 = sbr.rel (%p402) target = $region52
      $region51: #{moegpt_forward.15} parent=23 // pred_region
        %p405 = scmp.lt.s32.totalorder %s23, 3
        %s406 = scalar_select %p405, %s23, 3
        %s407 = scalar_lea.vmem %s8, %s406
      $region52: #{moegpt_forward.15} parent=23 // pred_fallthru
        _
    $region24: #{moegpt_forward.15} parent=5 // pred_fallthru
      _
    %p408 = scmp.le.s32.totalorder 1, %s15
    %p409 = scmp.lt.s32.totalorder %s15, 5
    %p410 = pnand %p408, %p409
    %p411 = pneg %p410
    // Predicated region
    $region53: #{moegpt_forward.15} parent=5 // pred_check
      _
    $region54: #{moegpt_forward.15} parent=5 // pred_check_branch
      %413 = sbr.rel (%p410) target = $region56
    $region55: #{moegpt_forward.15} parent=5 // pred_region
      %s414 = ssub.s32 %s15, 1
      %s415 = smul.u32 2, %s25
      %p416 = scmp.lt.s32.totalorder %s415, 1
      %s417 = scalar_select %p416, %s415, 1
      %s418 = smul.addr %s417, 8
      %s419 = scalar_lea.vmem %s0, %s418
      %p420 = pneg %p60
      %p421 = pneg %p57
      %p422 = pneg %p81
      %p423 = pneg %p78
      %s424 = smul.u32 2, %s25
      %p425 = scmp.lt.s32.totalorder %s26, 3
      %s426 = scalar_select %p425, %s26, 3
      %p427 = scmp.lt.s32.totalorder %s424, 1
      %s428 = scalar_select %p427, %s424, 1
      %s429 = smul.addr %s426, 2
      %s430 = sadd.s32 %s428, %s429
      %s431 = smul.addr %s430, 8
      %s432 = scalar_lea.vmem %s2, %s431
      %p433 = pneg %p109
      %p434 = pneg %p106
      %s435 = smul.u32 8, %s27
      %p436 = scmp.lt.s32.totalorder %s26, 3
      %s437 = scalar_select %p436, %s26, 3
      %p438 = scmp.lt.s32.totalorder %s435, 7
      %s439 = scalar_select %p438, %s435, 7
      %s440 = smul.addr %s437, 8
      %s441 = sadd.s32 %s439, %s440
      %s442 = smul.addr %s441, 8
      %s443 = scalar_lea.vmem %s3, %s442
      %p444 = pneg %p137
      %p445 = pneg %p134
      %p446 = scmp.lt.s32.totalorder %s26, 3
      %s447 = scalar_select %p446, %s26, 3
      %p448 = scmp.lt.s32.totalorder %s27, 0
      %s449 = scalar_select %p448, %s27, 0
      %s450 = sadd.s32 %s449, %s447
      %s451 = scalar_lea.vmem %s4, %s450
      %p452 = pneg %p165
      %p453 = pneg %p162
      %s454 = smul.u32 8, %s27
      %p455 = scmp.lt.s32.totalorder %s26, 3
      %s456 = scalar_select %p455, %s26, 3
      %p457 = scmp.lt.s32.totalorder %s454, 7
      %s458 = scalar_select %p457, %s454, 7
      %s459 = smul.addr %s456, 8
      %s460 = sadd.s32 %s458, %s459
      %s461 = smul.addr %s460, 8
      %s462 = scalar_lea.vmem %s5, %s461
      %p463 = pneg %p193
      %p464 = pneg %p190
      %p465 = scmp.lt.s32.totalorder %s26, 3
      %s466 = scalar_select %p465, %s26, 3
      %p467 = scmp.lt.s32.totalorder %s27, 0
      %s468 = scalar_select %p467, %s27, 0
      %s469 = sadd.s32 %s468, %s466
      %s470 = scalar_lea.vmem %s6, %s469
      %p471 = pneg %p221
      %p472 = pneg %p218
      %s473 = smul.u32 8, %s27
      %p474 = scmp.lt.s32.totalorder %s26, 3
      %s475 = scalar_select %p474, %s26, 3
      %p476 = scmp.lt.s32.totalorder %s473, 7
      %s477 = scalar_select %p476, %s473, 7
      %s478 = smul.addr %s475, 8
      %s479 = sadd.s32 %s477, %s478
      %s480 = smul.addr %s479, 8
      %s481 = scalar_lea.vmem %s7, %s480
      %p482 = pneg %p249
      %p483 = pneg %p246
      %p484 = scmp.lt.s32.totalorder %s26, 3
      %s485 = scalar_select %p484, %s26, 3
      %s486 = scalar_lea.vmem %s8, %s485
      %p487 = pneg %p275
      %p488 = pneg %p272
      %p489 = pneg %p301
      %p490 = pneg %p298
      %s491 = smul.u32 2, %s25
      %p492 = scmp.lt.s32.totalorder %s491, 1
      %s493 = scalar_select %p492, %s491, 1
      %s494 = smul.addr %s493, 8
      %s495 = scalar_lea.vmem %s9, %s494
      %s496 = smul.u32 2, %s25
      %p497 = scmp.lt.s32.totalorder %s496, 1
      %s498 = scalar_select %p497, %s496, 1
      %s499 = smul.addr %s498, 8
      %s500 = scalar_lea.vmem %s0, %s499
      %s501 = smul.u32 2, %s25
      %s502 = smul.u32 2, %s25
      %p503 = scmp.lt.s32.totalorder %s26, 3
      %s504 = scalar_select %p503, %s26, 3
      %p505 = scmp.lt.s32.totalorder %s502, 1
      %s506 = scalar_select %p505, %s502, 1
      %s507 = smul.addr %s504, 2
      %s508 = sadd.s32 %s506, %s507
      %s509 = smul.addr %s508, 8
      %s510 = scalar_lea.vmem %s2, %s509
      %s511 = smul.u32 2, %s25
      %s512 = smul.u32 8, %s27
      %p513 = scmp.lt.s32.totalorder %s26, 3
      %s514 = scalar_select %p513, %s26, 3
      %p515 = scmp.lt.s32.totalorder %s512, 7
      %s516 = scalar_select %p515, %s512, 7
      %s517 = smul.addr %s514, 8
      %s518 = sadd.s32 %s516, %s517
      %s519 = smul.addr %s518, 8
      %s520 = scalar_lea.vmem %s3, %s519
      %s521 = smul.u32 8, %s27
      %p522 = scmp.lt.s32.totalorder %s26, 3
      %s523 = scalar_select %p522, %s26, 3
      %p524 = scmp.lt.s32.totalorder %s27, 0
      %s525 = scalar_select %p524, %s27, 0
      %s526 = sadd.s32 %s525, %s523
      %s527 = scalar_lea.vmem %s4, %s526
      %s528 = smul.u32 8, %s27
      %p529 = scmp.lt.s32.totalorder %s26, 3
      %s530 = scalar_select %p529, %s26, 3
      %p531 = scmp.lt.s32.totalorder %s528, 7
      %s532 = scalar_select %p531, %s528, 7
      %s533 = smul.addr %s530, 8
      %s534 = sadd.s32 %s532, %s533
      %s535 = smul.addr %s534, 8
      %s536 = scalar_lea.vmem %s5, %s535
      %s537 = smul.u32 8, %s27
      %p538 = scmp.lt.s32.totalorder %s26, 3
      %s539 = scalar_select %p538, %s26, 3
      %p540 = scmp.lt.s32.totalorder %s27, 0
      %s541 = scalar_select %p540, %s27, 0
      %s542 = sadd.s32 %s541, %s539
      %s543 = scalar_lea.vmem %s6, %s542
      %s544 = smul.u32 8, %s27
      %p545 = scmp.lt.s32.totalorder %s26, 3
      %s546 = scalar_select %p545, %s26, 3
      %p547 = scmp.lt.s32.totalorder %s544, 7
      %s548 = scalar_select %p547, %s544, 7
      %s549 = smul.addr %s546, 8
      %s550 = sadd.s32 %s548, %s549
      %s551 = smul.addr %s550, 8
      %s552 = scalar_lea.vmem %s7, %s551
      %s553 = smul.u32 8, %s27
      %p554 = scmp.lt.s32.totalorder %s26, 3
      %s555 = scalar_select %p554, %s26, 3
      %s556 = scalar_lea.vmem %s8, %s555
      %s557 = smul.u32 2, %s25
      %p558 = scmp.lt.s32.totalorder %s557, 1
      %s559 = scalar_select %p558, %s557, 1
      %s560 = smul.addr %s559, 8
      %s561 = scalar_lea.vmem %s9, %s560
      %s562 = smul.u32 2, %s25
      %p564 = scmp.eq.s32.totalorder %s26, 0
      %p565 = scmp.eq.s32.totalorder %s27, 0
      %p566 = pnand %p564, %p565
      %p567 = pneg %p566
      // Predicated region
      $region57: #{moegpt_forward.15} parent=55 // pred_check
        _
      $region58: #{moegpt_forward.15} parent=55 // pred_check_branch
        %569 = sbr.rel (%p566) target = $region60
      $region59: #{moegpt_forward.15} parent=55 // pred_region
        %vm570 = vcmask 261120
        %571 = vst.msk [vmem:[#allocation2] sm:$0xff] %vm570, 0.0
        %572 = vst.msk [vmem:[#allocation2 + $0x8] sm:$0xff] %vm570, 0.0
      $region60: #{moegpt_forward.15} parent=55 // pred_fallthru
        _
      %v573 = vld [vmem:[%s500] sm:$0xff]
      %v574 = vld [vmem:[%s500 + $0x8] sm:$0xff]
      %v575 = vmul.f32 %v573, %v573
      %v576 = vmul.f32 %v574, %v574
      %vm577 = vcmask 261120
      %v578 = vsel %vm577, %v575, 0.0
      %579 = vadd.xlane.f32.xlu0 %v578
      %v580 = vpop.xlane.xlu0 %579
      %v581 = vsel %vm577, %v576, 0.0
      %582 = vadd.xlane.f32.xlu0 %v581
      %v583 = vpop.xlane.xlu0 %582
      %v584 = vrcp.pop 32.0
      %v585 = vmul.f32 32.0, %v584
      %v586 = vsub.f32 1.0, %v585
      %v587 = vmul.f32 %v584, %v586
      %v588 = vadd.f32 %v584, %v587
      %vm589 = vweird.f32 %v584
      %v590 = vsel %vm589, %v584, %v588
      %v591 = vmul.f32 %v580, %v590
      %v592 = vmul.f32 %v583, %v590
      %v593 = vadd.f32 %v591, 1e-05
      %v594 = vadd.f32 %v592, 1e-05
      %v595 = vrsqrt.pop %v593
      %v596 = vmul.f32 %v595, %v593
      %v597 = vmul.f32 %v596, %v595
      %v598 = vmul.f32 0.5, %v597
      %v599 = vsub.f32 1.5, %v598
      %v600 = vmul.f32 %v595, %v599
      %vm601 = vweird.f32 %v593
      %vm602 = vweird.f32 %v595
      %vm603 = vmor %vm601, %vm602
      %v604 = vsel %vm603, %v595, %v600
      %v605 = vrsqrt.pop %v594
      %v606 = vmul.f32 %v605, %v594
      %v607 = vmul.f32 %v606, %v605
      %v608 = vmul.f32 0.5, %v607
      %v609 = vsub.f32 1.5, %v608
      %v610 = vmul.f32 %v605, %v609
      %vm611 = vweird.f32 %v594
      %vm612 = vweird.f32 %v605
      %vm613 = vmor %vm611, %vm612
      %v614 = vsel %vm613, %v605, %v610
      %v615 = vmul.f32 %v573, %v604
      %v616 = vmul.f32 %v574, %v614
      %v617 = vld [vmem:[%s1] sm:$0x1]
      %v619 = vperm.slane %v617, 0
      %v621 = vmul.f32 %v615, %v619
      %v622 = vmul.f32 %v616, %v619
      %v623 = vpack.c.bf16 %v622, %v621
      %v624 = vld [vmem:[%s520] sm:$0xff]
      %v625 = vld [vmem:[%s520 + $0x8] sm:$0xff]
      %v626 = vld [vmem:[%s520 + $0x10] sm:$0xff]
      %v627 = vld [vmem:[%s520 + $0x18] sm:$0xff]
      %v628 = vld [vmem:[%s520 + $0x20] sm:$0xff]
      %v629 = vld [vmem:[%s520 + $0x28] sm:$0xff]
      %v630 = vld [vmem:[%s520 + $0x30] sm:$0xff]
      %v631 = vld [vmem:[%s520 + $0x38] sm:$0xff]
      %v632 = vpack.c.bf16 %v625, %v624
      %v633 = vpack.c.bf16 %v627, %v626
      %v634 = vpack.c.bf16 %v629, %v628
      %v635 = vpack.c.bf16 %v631, %v630
      %v636 = vld [vmem:[%s536] sm:$0xff]
      %v637 = vld [vmem:[%s536 + $0x8] sm:$0xff]
      %v638 = vld [vmem:[%s536 + $0x10] sm:$0xff]
      %v639 = vld [vmem:[%s536 + $0x18] sm:$0xff]
      %v640 = vld [vmem:[%s536 + $0x20] sm:$0xff]
      %v641 = vld [vmem:[%s536 + $0x28] sm:$0xff]
      %v642 = vld [vmem:[%s536 + $0x30] sm:$0xff]
      %v643 = vld [vmem:[%s536 + $0x38] sm:$0xff]
      %v644 = vpack.c.bf16 %v637, %v636
      %v645 = vpack.c.bf16 %v639, %v638
      %v646 = vpack.c.bf16 %v641, %v640
      %v647 = vpack.c.bf16 %v643, %v642
      %v648 = vld [vmem:[%s527] sm:$0x1]
      %v650 = vperm.slane %v648, 0
      %v653 = vsel %vm577, %v623, 0
      %v656 = vsel %vm577, %v632, 0
      %v659 = vsel %vm577, %v633, 0
      %v662 = vsel %vm577, %v634, 0
      %v665 = vsel %vm577, %v635, 0
      %667 = vmatpush.bf16.xpose.msra.mxu0 0
      %668 = vmatpush.bf16.xpose.msra.mxu0 0
      %669 = vmatpush.bf16.xpose.msra.mxu0 0
      %670 = vmatpush.bf16.xpose.msra.mxu0 0
      %671 = vmatpush.bf16.xpose.msra.mxu0 %v665
      %672 = vmatpush.bf16.xpose.msra.mxu0 %v662
      %673 = vmatpush.bf16.xpose.msra.mxu0 %v659
      %674 = vmatpush.bf16.xpose.msra.mxu0 %v656
      %675 = vmatmul.bf16.gmra.mxu0 %v653
      %v676 = vpop.f32.mrf.mxu0
      %v677 = vadd.f32 %v650, %v676
      %v678 = vpop.f32.mrf.mxu0
      %v679 = vadd.f32 %v650, %v678
      %680 = vdwg.mxu0
      %v681 = vld [vmem:[%s543] sm:$0x1]
      %v683 = vperm.slane %v681, 0
      %v686 = vsel %vm577, %v644, 0
      %v689 = vsel %vm577, %v645, 0
      %v692 = vsel %vm577, %v646, 0
      %v695 = vsel %vm577, %v647, 0
      %697 = vmatpush.bf16.xpose.msra.mxu0 0
      %698 = vmatpush.bf16.xpose.msra.mxu0 0
      %699 = vmatpush.bf16.xpose.msra.mxu0 0
      %700 = vmatpush.bf16.xpose.msra.mxu0 0
      %701 = vmatpush.bf16.xpose.msra.mxu0 %v695
      %702 = vmatpush.bf16.xpose.msra.mxu0 %v692
      %703 = vmatpush.bf16.xpose.msra.mxu0 %v689
      %704 = vmatpush.bf16.xpose.msra.mxu0 %v686
      %705 = vmatmul.bf16.gmra.mxu0 %v653
      %v706 = vpop.f32.mrf.mxu0
      %v707 = vadd.f32 %v683, %v706
      %v708 = vpop.f32.mrf.mxu0
      %v709 = vadd.f32 %v683, %v708
      %710 = vdwg.mxu0
      %v711 = vxor.u32 %v707, 2147483648
      %v712 = vxor.u32 %v709, 2147483648
      %v713 = vmul.f32 %v711, 1.442695
      %v714 = vpow.pop %v713
      %v715 = vmul.f32 %v712, 1.442695
      %v716 = vpow.pop %v715
      %v717 = vadd.f32 %v714, 1.0
      %v718 = vadd.f32 %v716, 1.0
      %v719 = vrcp.pop %v717
      %v720 = vmul.f32 %v717, %v719
      %v721 = vsub.f32 1.0, %v720
      %v722 = vmul.f32 %v719, %v721
      %v723 = vadd.f32 %v719, %v722
      %vm724 = vweird.f32 %v717
      %vm725 = vweird.f32 %v719
      %vm726 = vmor %vm724, %vm725
      %v727 = vsel %vm726, %v719, %v723
      %v728 = vand.u32 2147483647, %v717
      %vm729 = vcmp.eq.f32.partialorder %v728, 8.507059e+37
      %v730 = vand.u32 %v717, 2147483648
      %v731 = vor.u32 1.1754944e-38, %v730
      %v732 = vsel %vm729, %v731, %v727
      %v733 = vmul.f32 1.0, %v732
      %v734 = vrcp.pop %v718
      %v735 = vmul.f32 %v718, %v734
      %v736 = vsub.f32 1.0, %v735
      %v737 = vmul.f32 %v734, %v736
      %v738 = vadd.f32 %v734, %v737
      %vm739 = vweird.f32 %v718
      %vm740 = vweird.f32 %v734
      %vm741 = vmor %vm739, %vm740
      %v742 = vsel %vm741, %v734, %v738
      %v743 = vand.u32 2147483647, %v718
      %vm744 = vcmp.eq.f32.partialorder %v743, 8.507059e+37
      %v745 = vand.u32 %v718, 2147483648
      %v746 = vor.u32 1.1754944e-38, %v745
      %v747 = vsel %vm744, %v746, %v742
      %v748 = vmul.f32 1.0, %v747
      %v749 = vmul.f32 %v707, %v733
      %v750 = vmul.f32 %v709, %v748
      %v751 = vmul.f32 %v677, %v749
      %v752 = vmul.f32 %v679, %v750
      %v753 = vld [vmem:[%s552] sm:$0xff]
      %v754 = vld [vmem:[%s552 + $0x8] sm:$0xff]
      %v755 = vld [vmem:[%s552 + $0x10] sm:$0xff]
      %v756 = vld [vmem:[%s552 + $0x18] sm:$0xff]
      %v757 = vld [vmem:[%s552 + $0x20] sm:$0xff]
      %v758 = vld [vmem:[%s552 + $0x28] sm:$0xff]
      %v759 = vld [vmem:[%s552 + $0x30] sm:$0xff]
      %v760 = vld [vmem:[%s552 + $0x38] sm:$0xff]
      %v761 = vpack.c.bf16 %v754, %v753
      %v762 = vpack.c.bf16 %v756, %v755
      %v763 = vpack.c.bf16 %v758, %v757
      %v764 = vpack.c.bf16 %v760, %v759
      %v765 = vpack.c.bf16 %v752, %v751
      %s766 = scalar_select %p565, 1.0, 0.0
      %v767 = vld [vmem:[%s556] sm:$0x1]
      %v768 = vstv %s766
      %v769 = vmul.f32 %v768, %v767
      %v771 = vperm.slane %v769, 0
      %vm773 = vcmask 523264
      %v775 = vsel %vm773, %v765, 0
      %777 = vmatpush.bf16.msra.mxu0 0
      %778 = vmatpush.bf16.msra.mxu0 0
      %779 = vmatpush.bf16.msra.mxu0 0
      %780 = vmatpush.bf16.msra.mxu0 0
      %781 = vmatpush.bf16.msra.mxu0 %v764
      %782 = vmatpush.bf16.msra.mxu0 %v763
      %783 = vmatpush.bf16.msra.mxu0 %v762
      %784 = vmatpush.bf16.msra.mxu0 %v761
      %785 = vmatmul.bf16.gmra.mxu0 %v775
      %v786 = vpop.f32.mrf.mxu0
      %v787 = vadd.f32 %v771, %v786
      %v788 = vpop.f32.mrf.mxu0
      %v789 = vadd.f32 %v771, %v788
      %790 = vdwg.mxu0
      %v791 = vld [vmem:[%s510] sm:$0xff]
      %v792 = vld [vmem:[%s510 + $0x8] sm:$0xff]
      %v793 = vld [vmem:[#allocation2] sm:$0xff]
      %v794 = vld [vmem:[#allocation2 + $0x8] sm:$0xff]
      %796 = vset.pattern.permute.xlu0 0
      %797 = vperm.xlu0 %796, %v791
      %v798 = vpop.permute.xlu0 %797
      %801 = vset.pattern.permute.xlu0 0
      %802 = vperm.xlu0 %801, %v792
      %v803 = vpop.permute.xlu0 %802
      %v805 = vmul.f32 %v798, %v787
      %v806 = vmul.f32 %v803, %v789
      %v807 = vadd.f32 %v793, %v805
      %v808 = vadd.f32 %v794, %v806
      %809 = vst.msk [vmem:[#allocation2] sm:$0xff] %vm577, %v807
      %810 = vst.msk [vmem:[#allocation2 + $0x8] sm:$0xff] %vm577, %v808
      %p811 = scmp.eq.s32.totalorder %s26, 3
      %p812 = pnand %p811, %p565
      %p813 = pneg %p812
      // Predicated region
      $region61: #{moegpt_forward.15} parent=55 // pred_check
        _
      $region62: #{moegpt_forward.15} parent=55 // pred_check_branch
        %815 = sbr.rel (%p812) target = $region64
      $region63: #{moegpt_forward.15} parent=55 // pred_region
        %v816 = vld [vmem:[#allocation2] sm:$0xff]
        %v817 = vld [vmem:[#allocation2 + $0x8] sm:$0xff]
        %818 = vst.msk [vmem:[%s561] sm:$0xff] %vm577, %v816
        %819 = vst.msk [vmem:[%s561 + $0x8] sm:$0xff] %vm577, %v817
      $region64: #{moegpt_forward.15} parent=55 // pred_fallthru
        _
      %s820 = smul.u32 2, %s25
      %p821 = scmp.lt.s32.totalorder %s820, 1
      %s822 = scalar_select %p821, %s820, 1
      %s823 = smul.addr %s822, 8
      %s824 = scalar_lea.vmem %s9, %s823
      // Predicated region
      $region65: #{moegpt_forward.15} parent=55 // pred_check
        %p825 = pneg %p298
      $region66: #{moegpt_forward.15} parent=55 // pred_check_branch
        %827 = sbr.rel (%p825) target = $region68
      $region67: #{moegpt_forward.15} parent=55 // pred_region
        %s828 = smul.u32 2, %s25
      $region68: #{moegpt_forward.15} parent=55 // pred_fallthru
        _
      // Predicated region
      $region69: #{moegpt_forward.15} parent=55 // pred_check
        %p829 = pneg %p298
      $region70: #{moegpt_forward.15} parent=55 // pred_check_branch
        %831 = sbr.rel (%p829) target = $region72
      $region71: #{moegpt_forward.15} parent=55 // pred_region
        %s832 = smul.u32 2, %s25
        %p833 = scmp.lt.s32.totalorder %s832, 1
        %s834 = scalar_select %p833, %s832, 1
        %s835 = smul.addr %s834, 8
        %s836 = scalar_lea.vmem %s9, %s835
      $region72: #{moegpt_forward.15} parent=55 // pred_fallthru
        _
    $region56: #{moegpt_forward.15} parent=5 // pred_fallthru
      _
    %p837 = scmp.le.s32.totalorder 2, %s15
    // Predicated region
    $region73: #{moegpt_forward.15} parent=5 // pred_check
      %p838 = pneg %p837
    $region74: #{moegpt_forward.15} parent=5 // pred_check_branch
      %840 = sbr.rel (%p838) target = $region76
    $region75: #{moegpt_forward.15} parent=5 // pred_region
      %s841 = ssub.s32 %s15, 2
    $region76: #{moegpt_forward.15} parent=5 // pred_fallthru
      _
  $region6: #{moegpt_forward.15} parent=0 // loop_footer
    %s19 = sadd.s32 1, %s15
  $region7: #{moegpt_forward.15} parent=0 // loop_footer_branch
    %14 = sbr.rel target = $region3
  $region8: #{moegpt_forward.15} parent=0 // loop_exit
    _

</llo_original>
